<compile_context>
chip_gen: v6e
topology: v6e:2x2x1
jax: 0.10.0
libtpu: 0.0.40
codegen_flags: <defaults>
</compile_context>

<pallas_src>
import functools
import math

import jax
import jax.numpy as jnp
from jax.experimental import pallas as pl
from jax.experimental.pallas import tpu as pltpu

# ---- small synthetic config (mirrors the module's config, shrunk) ----
B, T, C = 2, 8, 32          # batch, seq (block_size), embedding_dim
H = 4                       # n_heads
D = C // H                  # head dim
E = 6                       # total_number_of_experts
EH = 2 * C                  # expert hidden dim
EPS = 1e-12                 # LayerNorm eps


def _layernorm(v, g, b):
    mu = jnp.mean(v, axis=-1, keepdims=True)
    var = jnp.mean((v - mu) ** 2, axis=-1, keepdims=True)
    return (v - mu) * jax.lax.rsqrt(var + EPS) * g + b


def bert_attention_kernel(x_ref,
                          wqkv_ref, bqkv_ref,
                          wao_ref, bao_ref, ln1_g_ref, ln1_b_ref,
                          wg_ref, bg_ref,
                          we1_ref, be1_ref, we2_ref, be2_ref,
                          wo_ref, bo_ref, ln2_g_ref, ln2_b_ref,
                          o_ref, *, seq, heads, head_dim, n_exp, exp_hidden):
    x = x_ref[...]                                                      # (T, C) f32
    x_bf = x.astype(jnp.bfloat16)

    # ---- fused QKV projection: one (T,C)@(C,3C) GEMM, bf16 ops / f32 accum ----
    qkv = jnp.dot(x_bf, wqkv_ref[...],
                  preferred_element_type=jnp.float32) + bqkv_ref[...]   # (T, 3C)
    # weight columns were packed (3, H, D) in the wrapper -> head split is a
    # pure reshape + minor-dim-preserving transpose (no lane-slice stacks).
    qkv = qkv.reshape(seq, 3 * heads, head_dim)
    qkv = jnp.transpose(qkv, (1, 0, 2)).astype(jnp.bfloat16)            # (3H, T, D)
    q = qkv[:heads]                                                     # (H, T, D)
    k = qkv[heads:2 * heads]
    v = qkv[2 * heads:]

    # ---- attention: batched contractions over heads, f32 scores ----
    scale = 1.0 / math.sqrt(head_dim)
    s = jnp.einsum('hqd,hkd->hqk', q, k,
                   preferred_element_type=jnp.float32) * scale          # (H, T, T)
    s = s - jnp.max(s, axis=-1, keepdims=True)
    es = jnp.exp(s)
    # approx reciprocal (EUP slot): per-row uniform scale, selection-preserving,
    # ~2^-12 relative error covered by the test tolerance.
    p = es * pl.reciprocal(jnp.sum(es, axis=-1, keepdims=True), approx=True)
    ctx = jnp.einsum('hqk,hkd->hqd', p.astype(jnp.bfloat16), v,
                     preferred_element_type=jnp.float32)                # (H, T, D)

    # head merge folded into the attention-output dense: one (T,C)@(C,C) GEMM,
    # no (H,T,C) intermediate and no extra reduce/store pass.
    ctx_flat = jnp.transpose(ctx, (1, 0, 2)).reshape(seq, heads * head_dim)
    attn_dense = jnp.dot(ctx_flat.astype(jnp.bfloat16), wao_ref[...],
                         preferred_element_type=jnp.float32) + bao_ref[...]
    x1 = x + _layernorm(attn_dense, ln1_g_ref[...], ln1_b_ref[...])     # (T, C)

    # ---- MoE router (f32): top-2 softmax gating (discrete decision) ----
    logits = jnp.dot(x1, wg_ref[...],
                     preferred_element_type=jnp.float32) + bg_ref[...]  # (T, E)
    z = logits - jnp.max(logits, axis=-1, keepdims=True)
    ez = jnp.exp(z)
    probs = ez * pl.reciprocal(jnp.sum(ez, axis=-1, keepdims=True), approx=True)
    top1 = jnp.max(probs, axis=-1, keepdims=True)
    rest = jnp.where(probs >= top1, 0.0, probs)
    top2 = jnp.max(rest, axis=-1, keepdims=True)
    # NOTE: exact ties keep >2 experts -- identical to the reference semantics.
    keep = (probs >= top2).astype(jnp.float32)
    masked = probs * keep
    # approx reciprocal here leaves a tiny (~2^-12) relative gate error; it is
    # NOT cancelled by the later LayerNorm, merely well within tolerance.
    gates = masked * pl.reciprocal(jnp.sum(masked, axis=-1, keepdims=True),
                                   approx=True)                          # (T, E)

    # ---- experts: two fused lane-dense GEMMs (bf16 ops / f32 accum); gates
    #      applied as a VPU multiply on the (T, E, EH) hidden (no broadcast GEMM).
    hidden = jnp.dot(x1.astype(jnp.bfloat16), we1_ref[...],
                     preferred_element_type=jnp.float32) + be1_ref[...]  # (T, E*EH)
    hidden = jax.nn.gelu(hidden, approximate=True)
    hidden = hidden.reshape(seq, n_exp, exp_hidden) * gates[:, :, None]
    scaled = hidden.reshape(seq, n_exp * exp_hidden).astype(jnp.bfloat16)
    moe = (jnp.dot(scaled, we2_ref[...], preferred_element_type=jnp.float32)
           + jnp.dot(gates, be2_ref[...], preferred_element_type=jnp.float32))

    # ---- final output dense + LayerNorm, residual ----
    out_dense = jnp.dot(moe.astype(jnp.bfloat16), wo_ref[...],
                        preferred_element_type=jnp.float32) + bo_ref[...]
    out = x1 + _layernorm(out_dense, ln2_g_ref[...], ln2_b_ref[...])
    o_ref[...] = out.astype(o_ref.dtype)


def bert_attention(x, params):
    """x: (B, T, C) float32; params: list in the original (unfused) order."""
    b_, t_, c_ = x.shape
    (wq, bq, wk, bk, wv, bv, wao, bao, ln1_g, ln1_b,
     wg, bg, we1, be1, we2, be2, wo, bo, ln2_g, ln2_b) = params

    # ---- one-time wrapper-side (XLA) weight packing / fusion ----
    # Each projection's output columns are already ordered (h, d), so plain
    # concatenation gives the (3, H, D) column order the kernel reshapes on.
    wqkv = jnp.concatenate([wq, wk, wv], axis=1).astype(jnp.bfloat16)    # (C, 3C)
    bqkv = jnp.concatenate([bq, bk, bv], axis=1)                         # (1, 3C)
    wao_bf = wao.astype(jnp.bfloat16)                                    # (C, C)
    we1_flat = (jnp.transpose(we1, (1, 0, 2))
                .reshape(c_, E * EH).astype(jnp.bfloat16))               # (C, E*EH)
    be1_flat = be1.reshape(1, E * EH)
    we2_flat = we2.reshape(E * EH, c_).astype(jnp.bfloat16)              # (E*EH, C)
    wo_bf = wo.astype(jnp.bfloat16)                                      # (C, C)

    inputs = (x, wqkv, bqkv, wao_bf, bao, ln1_g, ln1_b, wg, bg,
              we1_flat, be1_flat, we2_flat, be2, wo_bf, bo, ln2_g, ln2_b)

    # activations tiled per batch row (pipelined); weights whole-array resident.
    x_spec = pl.BlockSpec((None, t_, c_), lambda b: (b, 0, 0))
    out_spec = pl.BlockSpec((None, t_, c_), lambda b: (b, 0, 0))
    w_spec = pl.BlockSpec(memory_space=pltpu.MemorySpace.VMEM)

    out = pl.pallas_call(
        functools.partial(bert_attention_kernel, seq=t_, heads=H, head_dim=D,
                          n_exp=E, exp_hidden=EH),
        out_shape=jax.ShapeDtypeStruct((b_, t_, c_), x.dtype),
        grid=(b_,),
        in_specs=[x_spec] + [w_spec] * (len(inputs) - 1),
        out_specs=out_spec,
        compiler_params=pltpu.CompilerParams(
            dimension_semantics=("parallel",),       # 2x on v7x, no-op elsewhere
            vmem_limit_bytes=32 * 1024 * 1024),
    )(*inputs)
    return out


# ------------------------- plain-JAX f32 reference -------------------------
def reference(x, params):
    (wq, bq, wk, bk, wv, bv, wao, bao, g1, b1n, wg, bg,
     we1, be1, we2, be2, wo, bo, g2, b2n) = params

    q = (x @ wq + bq).reshape(B, T, H, D).transpose(0, 2, 1, 3)
    k = (x @ wk + bk).reshape(B, T, H, D).transpose(0, 2, 1, 3)
    v = (x @ wv + bv).reshape(B, T, H, D).transpose(0, 2, 1, 3)
    s = (q @ k.transpose(0, 1, 3, 2)) / math.sqrt(D)
    p = jax.nn.softmax(s, axis=-1)
    ctx = (p @ v).transpose(0, 2, 1, 3).reshape(B, T, C)

    attn_dense = ctx @ wao + bao
    x1 = x + _layernorm(attn_dense, g1, b1n)

    logits = x1 @ wg + bg
    probs = jax.nn.softmax(logits, axis=-1)
    top1 = jnp.max(probs, axis=-1, keepdims=True)
    rest = jnp.where(probs >= top1, 0.0, probs)
    top2 = jnp.max(rest, axis=-1, keepdims=True)
    keep = (probs >= top2).astype(jnp.float32)
    gates = probs * keep
    gates = gates / jnp.sum(gates, axis=-1, keepdims=True)

    moe_out = jnp.zeros_like(x1)
    for e in range(E):
        hidden = jax.nn.gelu(x1 @ we1[e] + be1[e], approximate=True)
        expert_out = hidden @ we2[e] + be2[e]
        moe_out = moe_out + gates[..., e:e + 1] * expert_out

    out_dense = moe_out @ wo + bo
    return x1 + _layernorm(out_dense, g2, b2n)


if __name__ == "__main__":
    key = jax.random.PRNGKey(0)
    ks = jax.random.split(key, 16)

    def nrm(k, shape, s=0.02):
        return (s * jax.random.normal(k, shape)).astype(jnp.float32)

    # attention projections
    wq, bq = nrm(ks[0], (C, C)), nrm(ks[1], (1, C))
    wk, bk = nrm(ks[2], (C, C)), nrm(ks[3], (1, C))
    wv, bv = nrm(ks[4], (C, C)), nrm(ks[5], (1, C))
    # attention output dense + LayerNorm
    wao, bao = nrm(ks[6], (C, C)), nrm(ks[7], (1, C))
    ln1_g = jnp.ones((1, C), jnp.float32)
    ln1_b = jnp.zeros((1, C), jnp.float32)
    # MoE router + experts.  Router bias is well-separated so the discrete
    # top-2 expert choice is never borderline; this keeps the bf16-kernel vs
    # f32-reference comparison well-posed (ties would be tolerance-uncoverable).
    wg = nrm(ks[8], (C, E))
    bg = (-1.0 * jnp.arange(E, dtype=jnp.float32)).reshape(1, E)
    we1, be1 = nrm(ks[10], (E, C, EH)), nrm(ks[11], (E, EH))
    we2, be2 = nrm(ks[12], (E, EH, C)), nrm(ks[13], (E, C))
    # final output dense + LayerNorm
    wo, bo = nrm(ks[14], (C, C)), nrm(ks[15], (1, C))
    ln2_g = jnp.ones((1, C), jnp.float32)
    ln2_b = jnp.zeros((1, C), jnp.float32)

    params = [wq, bq, wk, bk, wv, bv, wao, bao, ln1_g, ln1_b,
              wg, bg, we1, be1, we2, be2, wo, bo, ln2_g, ln2_b]

    x = jax.random.normal(jax.random.PRNGKey(42), (B, T, C), dtype=jnp.float32)

    out = bert_attention(x, params)
    out = jax.block_until_ready(out)

    ref = reference(x, params)
    assert out.shape == (B, T, C)
    # tolerance accounts for bf16 matmul operands (f32 accumulation) in the
    # kernel vs the all-f32 reference, amplified by the two LayerNorms.
    assert jnp.allclose(out, ref, atol=5e-2, rtol=5e-2), (
        f"mismatch: max abs err {jnp.max(jnp.abs(out - ref))}")

    print("KERNEL_OK")
</pallas_src>

<mosaic_0001>
module attributes {stable_mosaic.version = 11 : i64} {
  func.func @bert_attention_kernel(%arg0: i32, %arg1: memref<1x8x32xf32, #tpu.memory_space<vmem>>, %arg2: memref<32x96xbf16, #tpu.memory_space<vmem>>, %arg3: memref<1x96xf32, #tpu.memory_space<vmem>>, %arg4: memref<32x32xbf16, #tpu.memory_space<vmem>>, %arg5: memref<1x32xf32, #tpu.memory_space<vmem>>, %arg6: memref<1x32xf32, #tpu.memory_space<vmem>>, %arg7: memref<1x32xf32, #tpu.memory_space<vmem>>, %arg8: memref<32x6xf32, #tpu.memory_space<vmem>>, %arg9: memref<1x6xf32, #tpu.memory_space<vmem>>, %arg10: memref<32x384xbf16, #tpu.memory_space<vmem>>, %arg11: memref<1x384xf32, #tpu.memory_space<vmem>>, %arg12: memref<384x32xbf16, #tpu.memory_space<vmem>>, %arg13: memref<6x32xf32, #tpu.memory_space<vmem>>, %arg14: memref<32x32xbf16, #tpu.memory_space<vmem>>, %arg15: memref<1x32xf32, #tpu.memory_space<vmem>>, %arg16: memref<1x32xf32, #tpu.memory_space<vmem>>, %arg17: memref<1x32xf32, #tpu.memory_space<vmem>>, %arg18: memref<1x8x32xf32, #tpu.memory_space<vmem>>) attributes {dimension_semantics = [#tpu.dimension_semantics<parallel>], iteration_bounds = array<i64: 2>, scalar_prefetch = 0 : i64, scratch_operands = 0 : i64, tpu.core_type = #tpu.core_type<tc>, window_params = [{transform_indices = @transform_0, window_bounds = array<i64: 1, 8, 32>}, {pipeline_mode = #tpu.pipeline_mode<synchronous>, transform_indices = @transform_1, window_bounds = array<i64: 32, 96>}, {pipeline_mode = #tpu.pipeline_mode<synchronous>, transform_indices = @transform_2, window_bounds = array<i64: 1, 96>}, {pipeline_mode = #tpu.pipeline_mode<synchronous>, transform_indices = @transform_3, window_bounds = array<i64: 32, 32>}, {pipeline_mode = #tpu.pipeline_mode<synchronous>, transform_indices = @transform_4, window_bounds = array<i64: 1, 32>}, {pipeline_mode = #tpu.pipeline_mode<synchronous>, transform_indices = @transform_5, window_bounds = array<i64: 1, 32>}, {pipeline_mode = #tpu.pipeline_mode<synchronous>, transform_indices = @transform_6, window_bounds = array<i64: 1, 32>}, {pipeline_mode = #tpu.pipeline_mode<synchronous>, transform_indices = @transform_7, window_bounds = array<i64: 32, 6>}, {pipeline_mode = #tpu.pipeline_mode<synchronous>, transform_indices = @transform_8, window_bounds = array<i64: 1, 6>}, {pipeline_mode = #tpu.pipeline_mode<synchronous>, transform_indices = @transform_9, window_bounds = array<i64: 32, 384>}, {pipeline_mode = #tpu.pipeline_mode<synchronous>, transform_indices = @transform_10, window_bounds = array<i64: 1, 384>}, {pipeline_mode = #tpu.pipeline_mode<synchronous>, transform_indices = @transform_11, window_bounds = array<i64: 384, 32>}, {pipeline_mode = #tpu.pipeline_mode<synchronous>, transform_indices = @transform_12, window_bounds = array<i64: 6, 32>}, {pipeline_mode = #tpu.pipeline_mode<synchronous>, transform_indices = @transform_13, window_bounds = array<i64: 32, 32>}, {pipeline_mode = #tpu.pipeline_mode<synchronous>, transform_indices = @transform_14, window_bounds = array<i64: 1, 32>}, {pipeline_mode = #tpu.pipeline_mode<synchronous>, transform_indices = @transform_15, window_bounds = array<i64: 1, 32>}, {pipeline_mode = #tpu.pipeline_mode<synchronous>, transform_indices = @transform_16, window_bounds = array<i64: 1, 32>}, {transform_indices = @transform_17, window_bounds = array<i64: 1, 8, 32>}]} {
    %c0 = arith.constant 0 : index
    %c0_0 = arith.constant 0 : index
    %c0_1 = arith.constant 0 : index
    %0 = vector.load %arg1[%c0, %c0_0, %c0_1] : memref<1x8x32xf32, #tpu.memory_space<vmem>>, vector<1x8x32xf32>
    %1 = vector.shape_cast %0 : vector<1x8x32xf32> to vector<8x32xf32>
    %2 = arith.truncf %1 : vector<8x32xf32> to vector<8x32xbf16>
    %c0_2 = arith.constant 0 : index
    %c0_3 = arith.constant 0 : index
    %3 = vector.load %arg2[%c0_2, %c0_3] : memref<32x96xbf16, #tpu.memory_space<vmem>>, vector<32x96xbf16>
    %cst = arith.constant dense<0.000000e+00> : vector<8x96xf32>
    %4 = tpu.matmul %2, %3, %cst {dimension_numbers = #tpu.dot_dimension_numbers<[1], [0], [0], [1], [0, 0, 1, 1], [], []>} : vector<8x32xbf16>, vector<32x96xbf16>, vector<8x96xf32> -> vector<8x96xf32>
    %c0_4 = arith.constant 0 : index
    %c0_5 = arith.constant 0 : index
    %5 = vector.load %arg3[%c0_4, %c0_5] : memref<1x96xf32, #tpu.memory_space<vmem>>, vector<1x96xf32>
    %6 = vector.broadcast %5 : vector<1x96xf32> to vector<8x96xf32>
    %7 = arith.addf %4, %6 : vector<8x96xf32>
    %8 = vector.shape_cast %7 : vector<8x96xf32> to vector<8x12x8xf32>
    %9 = tpu.transpose %8, [1, 0, 2] : vector<8x12x8xf32> -> vector<12x8x8xf32>
    %10 = arith.truncf %9 : vector<12x8x8xf32> to vector<12x8x8xbf16>
    %11 = vector.extract_strided_slice %10 {offsets = [0, 0, 0], sizes = [4, 8, 8], strides = [1, 1, 1]} : vector<12x8x8xbf16> to vector<4x8x8xbf16>
    %12 = vector.extract_strided_slice %10 {offsets = [4, 0, 0], sizes = [4, 8, 8], strides = [1, 1, 1]} : vector<12x8x8xbf16> to vector<4x8x8xbf16>
    %13 = vector.extract_strided_slice %10 {offsets = [8, 0, 0], sizes = [4, 8, 8], strides = [1, 1, 1]} : vector<12x8x8xbf16> to vector<4x8x8xbf16>
    "tpu.trace_start"() <{level = 10 : i32, message = "hqd,hkd->hqk"}> : () -> ()
    %cst_6 = arith.constant dense<0.000000e+00> : vector<4x8x8xf32>
    %14 = tpu.matmul %11, %12, %cst_6 {dimension_numbers = #tpu.dot_dimension_numbers<[2], [2], [1], [1], [0, 0, 0, 1, 1, 1], [0], [0]>} : vector<4x8x8xbf16>, vector<4x8x8xbf16>, vector<4x8x8xf32> -> vector<4x8x8xf32>
    "tpu.trace_stop"() : () -> ()
    %cst_7 = arith.constant 0.353553385 : f32
    %15 = vector.broadcast %cst_7 : f32 to vector<4x8x8xf32>
    %16 = arith.mulf %14, %15 : vector<4x8x8xf32>
    %cst_8 = arith.constant dense<0xFF800000> : vector<4x8xf32>
    %17 = vector.multi_reduction <maximumf>, %16, %cst_8 [2] : vector<4x8x8xf32> to vector<4x8xf32>
    %18 = vector.shape_cast %17 : vector<4x8xf32> to vector<4x8x1xf32>
    %19 = vector.broadcast %18 : vector<4x8x1xf32> to vector<4x8x8xf32>
    %20 = arith.subf %16, %19 : vector<4x8x8xf32>
    %21 = math.exp %20 : vector<4x8x8xf32>
    %cst_9 = arith.constant dense<0.000000e+00> : vector<4x8xf32>
    %22 = vector.multi_reduction <add>, %21, %cst_9 [2] : vector<4x8x8xf32> to vector<4x8xf32>
    %23 = vector.shape_cast %22 : vector<4x8xf32> to vector<4x8x1xf32>
    %24 = tpu.reciprocal %23 {approx = true} : vector<4x8x1xf32> -> vector<4x8x1xf32>
    %25 = vector.broadcast %24 : vector<4x8x1xf32> to vector<4x8x8xf32>
    %26 = arith.mulf %21, %25 : vector<4x8x8xf32>
    %27 = arith.truncf %26 : vector<4x8x8xf32> to vector<4x8x8xbf16>
    "tpu.trace_start"() <{level = 10 : i32, message = "hqk,hkd->hqd"}> : () -> ()
    %cst_10 = arith.constant dense<0.000000e+00> : vector<4x8x8xf32>
    %28 = tpu.matmul %27, %13, %cst_10 {dimension_numbers = #tpu.dot_dimension_numbers<[2], [1], [1], [2], [0, 0, 0, 1, 1, 2], [0], [0]>} : vector<4x8x8xbf16>, vector<4x8x8xbf16>, vector<4x8x8xf32> -> vector<4x8x8xf32>
    "tpu.trace_stop"() : () -> ()
    %29 = tpu.transpose %28, [1, 0, 2] : vector<4x8x8xf32> -> vector<8x4x8xf32>
    %30 = vector.shape_cast %29 : vector<8x4x8xf32> to vector<8x32xf32>
    %31 = arith.truncf %30 : vector<8x32xf32> to vector<8x32xbf16>
    %c0_11 = arith.constant 0 : index
    %c0_12 = arith.constant 0 : index
    %32 = vector.load %arg4[%c0_11, %c0_12] : memref<32x32xbf16, #tpu.memory_space<vmem>>, vector<32x32xbf16>
    %cst_13 = arith.constant dense<0.000000e+00> : vector<8x32xf32>
    %33 = tpu.matmul %31, %32, %cst_13 {dimension_numbers = #tpu.dot_dimension_numbers<[1], [0], [0], [1], [0, 0, 1, 1], [], []>} : vector<8x32xbf16>, vector<32x32xbf16>, vector<8x32xf32> -> vector<8x32xf32>
    %c0_14 = arith.constant 0 : index
    %c0_15 = arith.constant 0 : index
    %34 = vector.load %arg5[%c0_14, %c0_15] : memref<1x32xf32, #tpu.memory_space<vmem>>, vector<1x32xf32>
    %35 = vector.broadcast %34 : vector<1x32xf32> to vector<8x32xf32>
    %36 = arith.addf %33, %35 : vector<8x32xf32>
    %c0_16 = arith.constant 0 : index
    %c0_17 = arith.constant 0 : index
    %37 = vector.load %arg6[%c0_16, %c0_17] : memref<1x32xf32, #tpu.memory_space<vmem>>, vector<1x32xf32>
    %c0_18 = arith.constant 0 : index
    %c0_19 = arith.constant 0 : index
    %38 = vector.load %arg7[%c0_18, %c0_19] : memref<1x32xf32, #tpu.memory_space<vmem>>, vector<1x32xf32>
    %cst_20 = arith.constant dense<0.000000e+00> : vector<8xf32>
    %39 = vector.multi_reduction <add>, %36, %cst_20 [1] : vector<8x32xf32> to vector<8xf32>
    %40 = vector.shape_cast %39 : vector<8xf32> to vector<8x1xf32>
    %cst_21 = arith.constant 3.200000e+01 : f32
    %41 = vector.broadcast %cst_21 : f32 to vector<8x1xf32>
    %42 = arith.divf %40, %41 : vector<8x1xf32>
    %43 = vector.broadcast %42 : vector<8x1xf32> to vector<8x32xf32>
    %44 = arith.subf %36, %43 : vector<8x32xf32>
    %45 = arith.mulf %44, %44 : vector<8x32xf32>
    %cst_22 = arith.constant dense<0.000000e+00> : vector<8xf32>
    %46 = vector.multi_reduction <add>, %45, %cst_22 [1] : vector<8x32xf32> to vector<8xf32>
    %47 = vector.shape_cast %46 : vector<8xf32> to vector<8x1xf32>
    %cst_23 = arith.constant 3.200000e+01 : f32
    %48 = vector.broadcast %cst_23 : f32 to vector<8x1xf32>
    %49 = arith.divf %47, %48 : vector<8x1xf32>
    %50 = vector.broadcast %42 : vector<8x1xf32> to vector<8x32xf32>
    %51 = arith.subf %36, %50 : vector<8x32xf32>
    %cst_24 = arith.constant 9.99999996E-13 : f32
    %52 = vector.broadcast %cst_24 : f32 to vector<8x1xf32>
    %53 = arith.addf %49, %52 : vector<8x1xf32>
    %54 = math.rsqrt %53 : vector<8x1xf32>
    %55 = vector.broadcast %54 : vector<8x1xf32> to vector<8x32xf32>
    %56 = arith.mulf %51, %55 : vector<8x32xf32>
    %57 = vector.broadcast %37 : vector<1x32xf32> to vector<8x32xf32>
    %58 = arith.mulf %56, %57 : vector<8x32xf32>
    %59 = vector.broadcast %38 : vector<1x32xf32> to vector<8x32xf32>
    %60 = arith.addf %58, %59 : vector<8x32xf32>
    %61 = arith.addf %1, %60 : vector<8x32xf32>
    %c0_25 = arith.constant 0 : index
    %c0_26 = arith.constant 0 : index
    %62 = vector.load %arg8[%c0_25, %c0_26] : memref<32x6xf32, #tpu.memory_space<vmem>>, vector<32x6xf32>
    %cst_27 = arith.constant dense<0.000000e+00> : vector<8x6xf32>
    %63 = tpu.matmul %61, %62, %cst_27 {dimension_numbers = #tpu.dot_dimension_numbers<[1], [0], [0], [1], [0, 0, 1, 1], [], []>} : vector<8x32xf32>, vector<32x6xf32>, vector<8x6xf32> -> vector<8x6xf32>
    %c0_28 = arith.constant 0 : index
    %c0_29 = arith.constant 0 : index
    %64 = vector.load %arg9[%c0_28, %c0_29] : memref<1x6xf32, #tpu.memory_space<vmem>>, vector<1x6xf32>
    %65 = vector.broadcast %64 : vector<1x6xf32> to vector<8x6xf32>
    %66 = arith.addf %63, %65 : vector<8x6xf32>
    %cst_30 = arith.constant dense<0xFF800000> : vector<8xf32>
    %67 = vector.multi_reduction <maximumf>, %66, %cst_30 [1] : vector<8x6xf32> to vector<8xf32>
    %68 = vector.shape_cast %67 : vector<8xf32> to vector<8x1xf32>
    %69 = vector.broadcast %68 : vector<8x1xf32> to vector<8x6xf32>
    %70 = arith.subf %66, %69 : vector<8x6xf32>
    %71 = math.exp %70 : vector<8x6xf32>
    %cst_31 = arith.constant dense<0.000000e+00> : vector<8xf32>
    %72 = vector.multi_reduction <add>, %71, %cst_31 [1] : vector<8x6xf32> to vector<8xf32>
    %73 = vector.shape_cast %72 : vector<8xf32> to vector<8x1xf32>
    %74 = tpu.reciprocal %73 {approx = true} : vector<8x1xf32> -> vector<8x1xf32>
    %75 = vector.broadcast %74 : vector<8x1xf32> to vector<8x6xf32>
    %76 = arith.mulf %71, %75 : vector<8x6xf32>
    %cst_32 = arith.constant dense<0xFF800000> : vector<8xf32>
    %77 = vector.multi_reduction <maximumf>, %76, %cst_32 [1] : vector<8x6xf32> to vector<8xf32>
    %78 = vector.shape_cast %77 : vector<8xf32> to vector<8x1xf32>
    %79 = vector.broadcast %78 : vector<8x1xf32> to vector<8x6xf32>
    %80 = arith.cmpf oge, %76, %79 : vector<8x6xf32>
    %cst_33 = arith.constant 0.000000e+00 : f32
    %81 = vector.broadcast %cst_33 : f32 to vector<8x6xf32>
    %82 = arith.select %80, %81, %76 : vector<8x6xi1>, vector<8x6xf32>
    %cst_34 = arith.constant dense<0xFF800000> : vector<8xf32>
    %83 = vector.multi_reduction <maximumf>, %82, %cst_34 [1] : vector<8x6xf32> to vector<8xf32>
    %84 = vector.shape_cast %83 : vector<8xf32> to vector<8x1xf32>
    %85 = vector.broadcast %84 : vector<8x1xf32> to vector<8x6xf32>
    %86 = arith.cmpf oge, %76, %85 : vector<8x6xf32>
    %87 = arith.extui %86 : vector<8x6xi1> to vector<8x6xi32>
    %88 = arith.sitofp %87 : vector<8x6xi32> to vector<8x6xf32>
    %89 = arith.mulf %76, %88 : vector<8x6xf32>
    %cst_35 = arith.constant dense<0.000000e+00> : vector<8xf32>
    %90 = vector.multi_reduction <add>, %89, %cst_35 [1] : vector<8x6xf32> to vector<8xf32>
    %91 = vector.shape_cast %90 : vector<8xf32> to vector<8x1xf32>
    %92 = tpu.reciprocal %91 {approx = true} : vector<8x1xf32> -> vector<8x1xf32>
    %93 = vector.broadcast %92 : vector<8x1xf32> to vector<8x6xf32>
    %94 = arith.mulf %89, %93 : vector<8x6xf32>
    %95 = arith.truncf %61 : vector<8x32xf32> to vector<8x32xbf16>
    %c0_36 = arith.constant 0 : index
    %c0_37 = arith.constant 0 : index
    %96 = vector.load %arg10[%c0_36, %c0_37] : memref<32x384xbf16, #tpu.memory_space<vmem>>, vector<32x384xbf16>
    %cst_38 = arith.constant dense<0.000000e+00> : vector<8x384xf32>
    %97 = tpu.matmul %95, %96, %cst_38 {dimension_numbers = #tpu.dot_dimension_numbers<[1], [0], [0], [1], [0, 0, 1, 1], [], []>} : vector<8x32xbf16>, vector<32x384xbf16>, vector<8x384xf32> -> vector<8x384xf32>
    %c0_39 = arith.constant 0 : index
    %c0_40 = arith.constant 0 : index
    %98 = vector.load %arg11[%c0_39, %c0_40] : memref<1x384xf32, #tpu.memory_space<vmem>>, vector<1x384xf32>
    %99 = vector.broadcast %98 : vector<1x384xf32> to vector<8x384xf32>
    %100 = arith.addf %97, %99 : vector<8x384xf32>
    %101 = arith.mulf %100, %100 : vector<8x384xf32>
    %102 = arith.mulf %100, %101 : vector<8x384xf32>
    %cst_41 = arith.constant 4.471500e-02 : f32
    %103 = vector.broadcast %cst_41 : f32 to vector<8x384xf32>
    %104 = arith.mulf %103, %102 : vector<8x384xf32>
    %105 = arith.addf %100, %104 : vector<8x384xf32>
    %cst_42 = arith.constant 0.797884583 : f32
    %106 = vector.broadcast %cst_42 : f32 to vector<8x384xf32>
    %107 = arith.mulf %106, %105 : vector<8x384xf32>
    %108 = math.tanh %107 : vector<8x384xf32>
    %cst_43 = arith.constant 1.000000e+00 : f32
    %109 = vector.broadcast %cst_43 : f32 to vector<8x384xf32>
    %110 = arith.addf %109, %108 : vector<8x384xf32>
    %cst_44 = arith.constant 5.000000e-01 : f32
    %111 = vector.broadcast %cst_44 : f32 to vector<8x384xf32>
    %112 = arith.mulf %111, %110 : vector<8x384xf32>
    %113 = arith.mulf %100, %112 : vector<8x384xf32>
    %114 = vector.shape_cast %113 : vector<8x384xf32> to vector<8x6x64xf32>
    %115 = vector.shape_cast %94 : vector<8x6xf32> to vector<8x6x1xf32>
    %116 = vector.broadcast %115 : vector<8x6x1xf32> to vector<8x6x64xf32>
    %117 = arith.mulf %114, %116 : vector<8x6x64xf32>
    %118 = vector.shape_cast %117 : vector<8x6x64xf32> to vector<8x384xf32>
    %119 = arith.truncf %118 : vector<8x384xf32> to vector<8x384xbf16>
    %c0_45 = arith.constant 0 : index
    %c0_46 = arith.constant 0 : index
    %120 = vector.load %arg12[%c0_45, %c0_46] : memref<384x32xbf16, #tpu.memory_space<vmem>>, vector<384x32xbf16>
    %cst_47 = arith.constant dense<0.000000e+00> : vector<8x32xf32>
    %121 = tpu.matmul %119, %120, %cst_47 {dimension_numbers = #tpu.dot_dimension_numbers<[1], [0], [0], [1], [0, 0, 1, 1], [], []>} : vector<8x384xbf16>, vector<384x32xbf16>, vector<8x32xf32> -> vector<8x32xf32>
    %c0_48 = arith.constant 0 : index
    %c0_49 = arith.constant 0 : index
    %122 = vector.load %arg13[%c0_48, %c0_49] : memref<6x32xf32, #tpu.memory_space<vmem>>, vector<6x32xf32>
    %cst_50 = arith.constant dense<0.000000e+00> : vector<8x32xf32>
    %123 = tpu.matmul %94, %122, %cst_50 {dimension_numbers = #tpu.dot_dimension_numbers<[1], [0], [0], [1], [0, 0, 1, 1], [], []>} : vector<8x6xf32>, vector<6x32xf32>, vector<8x32xf32> -> vector<8x32xf32>
    %124 = arith.addf %121, %123 : vector<8x32xf32>
    %125 = arith.truncf %124 : vector<8x32xf32> to vector<8x32xbf16>
    %c0_51 = arith.constant 0 : index
    %c0_52 = arith.constant 0 : index
    %126 = vector.load %arg14[%c0_51, %c0_52] : memref<32x32xbf16, #tpu.memory_space<vmem>>, vector<32x32xbf16>
    %cst_53 = arith.constant dense<0.000000e+00> : vector<8x32xf32>
    %127 = tpu.matmul %125, %126, %cst_53 {dimension_numbers = #tpu.dot_dimension_numbers<[1], [0], [0], [1], [0, 0, 1, 1], [], []>} : vector<8x32xbf16>, vector<32x32xbf16>, vector<8x32xf32> -> vector<8x32xf32>
    %c0_54 = arith.constant 0 : index
    %c0_55 = arith.constant 0 : index
    %128 = vector.load %arg15[%c0_54, %c0_55] : memref<1x32xf32, #tpu.memory_space<vmem>>, vector<1x32xf32>
    %129 = vector.broadcast %128 : vector<1x32xf32> to vector<8x32xf32>
    %130 = arith.addf %127, %129 : vector<8x32xf32>
    %c0_56 = arith.constant 0 : index
    %c0_57 = arith.constant 0 : index
    %131 = vector.load %arg16[%c0_56, %c0_57] : memref<1x32xf32, #tpu.memory_space<vmem>>, vector<1x32xf32>
    %c0_58 = arith.constant 0 : index
    %c0_59 = arith.constant 0 : index
    %132 = vector.load %arg17[%c0_58, %c0_59] : memref<1x32xf32, #tpu.memory_space<vmem>>, vector<1x32xf32>
    %cst_60 = arith.constant dense<0.000000e+00> : vector<8xf32>
    %133 = vector.multi_reduction <add>, %130, %cst_60 [1] : vector<8x32xf32> to vector<8xf32>
    %134 = vector.shape_cast %133 : vector<8xf32> to vector<8x1xf32>
    %cst_61 = arith.constant 3.200000e+01 : f32
    %135 = vector.broadcast %cst_61 : f32 to vector<8x1xf32>
    %136 = arith.divf %134, %135 : vector<8x1xf32>
    %137 = vector.broadcast %136 : vector<8x1xf32> to vector<8x32xf32>
    %138 = arith.subf %130, %137 : vector<8x32xf32>
    %139 = arith.mulf %138, %138 : vector<8x32xf32>
    %cst_62 = arith.constant dense<0.000000e+00> : vector<8xf32>
    %140 = vector.multi_reduction <add>, %139, %cst_62 [1] : vector<8x32xf32> to vector<8xf32>
    %141 = vector.shape_cast %140 : vector<8xf32> to vector<8x1xf32>
    %cst_63 = arith.constant 3.200000e+01 : f32
    %142 = vector.broadcast %cst_63 : f32 to vector<8x1xf32>
    %143 = arith.divf %141, %142 : vector<8x1xf32>
    %144 = vector.broadcast %136 : vector<8x1xf32> to vector<8x32xf32>
    %145 = arith.subf %130, %144 : vector<8x32xf32>
    %cst_64 = arith.constant 9.99999996E-13 : f32
    %146 = vector.broadcast %cst_64 : f32 to vector<8x1xf32>
    %147 = arith.addf %143, %146 : vector<8x1xf32>
    %148 = math.rsqrt %147 : vector<8x1xf32>
    %149 = vector.broadcast %148 : vector<8x1xf32> to vector<8x32xf32>
    %150 = arith.mulf %145, %149 : vector<8x32xf32>
    %151 = vector.broadcast %131 : vector<1x32xf32> to vector<8x32xf32>
    %152 = arith.mulf %150, %151 : vector<8x32xf32>
    %153 = vector.broadcast %132 : vector<1x32xf32> to vector<8x32xf32>
    %154 = arith.addf %152, %153 : vector<8x32xf32>
    %155 = arith.addf %61, %154 : vector<8x32xf32>
    %c0_65 = arith.constant 0 : index
    %c0_66 = arith.constant 0 : index
    %c0_67 = arith.constant 0 : index
    %156 = vector.load %arg18[%c0_65, %c0_66, %c0_67] : memref<1x8x32xf32, #tpu.memory_space<vmem>>, vector<1x8x32xf32>
    %157 = vector.shape_cast %156 : vector<1x8x32xf32> to vector<8x32xf32>
    %158 = vector.shape_cast %155 : vector<8x32xf32> to vector<1x8x32xf32>
    tpu.vector_store %arg18[%c0_65, %c0_66, %c0_67], %158 {strides = array<i32>} : memref<1x8x32xf32, #tpu.memory_space<vmem>>, vector<1x8x32xf32>,
    return
  }
  func.func @transform_0(%arg0: i32) -> (i32, i32, i32) {
    %c0_i32 = arith.constant 0 : i32
    %c0_i32_0 = arith.constant 0 : i32
    %c0_i32_1 = arith.constant 0 : i32
    return %arg0, %c0_i32, %c0_i32_0 : i32, i32, i32
  }
  func.func @transform_1(%arg0: i32) -> (i32, i32) {
    %c0_i32 = arith.constant 0 : i32
    %c0_i32_0 = arith.constant 0 : i32
    %c0_i32_1 = arith.constant 0 : i32
    return %c0_i32, %c0_i32_0 : i32, i32
  }
  func.func @transform_2(%arg0: i32) -> (i32, i32) {
    %c0_i32 = arith.constant 0 : i32
    %c0_i32_0 = arith.constant 0 : i32
    %c0_i32_1 = arith.constant 0 : i32
    return %c0_i32, %c0_i32_0 : i32, i32
  }
  func.func @transform_3(%arg0: i32) -> (i32, i32) {
    %c0_i32 = arith.constant 0 : i32
    %c0_i32_0 = arith.constant 0 : i32
    %c0_i32_1 = arith.constant 0 : i32
    return %c0_i32, %c0_i32_0 : i32, i32
  }
  func.func @transform_4(%arg0: i32) -> (i32, i32) {
    %c0_i32 = arith.constant 0 : i32
    %c0_i32_0 = arith.constant 0 : i32
    %c0_i32_1 = arith.constant 0 : i32
    return %c0_i32, %c0_i32_0 : i32, i32
  }
  func.func @transform_5(%arg0: i32) -> (i32, i32) {
    %c0_i32 = arith.constant 0 : i32
    %c0_i32_0 = arith.constant 0 : i32
    %c0_i32_1 = arith.constant 0 : i32
    return %c0_i32, %c0_i32_0 : i32, i32
  }
  func.func @transform_6(%arg0: i32) -> (i32, i32) {
    %c0_i32 = arith.constant 0 : i32
    %c0_i32_0 = arith.constant 0 : i32
    %c0_i32_1 = arith.constant 0 : i32
    return %c0_i32, %c0_i32_0 : i32, i32
  }
  func.func @transform_7(%arg0: i32) -> (i32, i32) {
    %c0_i32 = arith.constant 0 : i32
    %c0_i32_0 = arith.constant 0 : i32
    %c0_i32_1 = arith.constant 0 : i32
    return %c0_i32, %c0_i32_0 : i32, i32
  }
  func.func @transform_8(%arg0: i32) -> (i32, i32) {
    %c0_i32 = arith.constant 0 : i32
    %c0_i32_0 = arith.constant 0 : i32
    %c0_i32_1 = arith.constant 0 : i32
    return %c0_i32, %c0_i32_0 : i32, i32
  }
  func.func @transform_9(%arg0: i32) -> (i32, i32) {
    %c0_i32 = arith.constant 0 : i32
    %c0_i32_0 = arith.constant 0 : i32
    %c0_i32_1 = arith.constant 0 : i32
    return %c0_i32, %c0_i32_0 : i32, i32
  }
  func.func @transform_10(%arg0: i32) -> (i32, i32) {
    %c0_i32 = arith.constant 0 : i32
    %c0_i32_0 = arith.constant 0 : i32
    %c0_i32_1 = arith.constant 0 : i32
    return %c0_i32, %c0_i32_0 : i32, i32
  }
  func.func @transform_11(%arg0: i32) -> (i32, i32) {
    %c0_i32 = arith.constant 0 : i32
    %c0_i32_0 = arith.constant 0 : i32
    %c0_i32_1 = arith.constant 0 : i32
    return %c0_i32, %c0_i32_0 : i32, i32
  }
  func.func @transform_12(%arg0: i32) -> (i32, i32) {
    %c0_i32 = arith.constant 0 : i32
    %c0_i32_0 = arith.constant 0 : i32
    %c0_i32_1 = arith.constant 0 : i32
    return %c0_i32, %c0_i32_0 : i32, i32
  }
  func.func @transform_13(%arg0: i32) -> (i32, i32) {
    %c0_i32 = arith.constant 0 : i32
    %c0_i32_0 = arith.constant 0 : i32
    %c0_i32_1 = arith.constant 0 : i32
    return %c0_i32, %c0_i32_0 : i32, i32
  }
  func.func @transform_14(%arg0: i32) -> (i32, i32) {
    %c0_i32 = arith.constant 0 : i32
    %c0_i32_0 = arith.constant 0 : i32
    %c0_i32_1 = arith.constant 0 : i32
    return %c0_i32, %c0_i32_0 : i32, i32
  }
  func.func @transform_15(%arg0: i32) -> (i32, i32) {
    %c0_i32 = arith.constant 0 : i32
    %c0_i32_0 = arith.constant 0 : i32
    %c0_i32_1 = arith.constant 0 : i32
    return %c0_i32, %c0_i32_0 : i32, i32
  }
  func.func @transform_16(%arg0: i32) -> (i32, i32) {
    %c0_i32 = arith.constant 0 : i32
    %c0_i32_0 = arith.constant 0 : i32
    %c0_i32_1 = arith.constant 0 : i32
    return %c0_i32, %c0_i32_0 : i32, i32
  }
  func.func @transform_17(%arg0: i32) -> (i32, i32, i32) {
    %c0_i32 = arith.constant 0 : i32
    %c0_i32_0 = arith.constant 0 : i32
    %c0_i32_1 = arith.constant 0 : i32
    return %arg0, %c0_i32, %c0_i32_0 : i32, i32, i32
  }
}

</mosaic_0001>

<llo_original>
// kernel: tpu_custom_call.1
$region0: #{tpu_custom_call.1}
  #allocation0 [shape = 'u32[]', space=smem, size = 0x4, offset = 0x4, fixed_abs, tag = 'smem constant byte address 0x4 - core index']
  #allocation1 [shape = 'u32[144,128]{1,0:T(1,128)}', space=vmem, size = 0x12000, scoped, tag = 'internal scratch']
  %s0 = inlined_call_operand.vmem [shape: f32[2,8,32], index: 0, kind: input, shape index: {}]
  %s1 = inlined_call_operand.vmem [shape: bf16[32,96], index: 1, kind: input, shape index: {}]
  %s2 = inlined_call_operand.vmem [shape: f32[1,96], index: 2, kind: input, shape index: {}]
  %s3 = inlined_call_operand.vmem [shape: bf16[32,32], index: 3, kind: input, shape index: {}]
  %s4 = inlined_call_operand.vmem [shape: f32[1,32], index: 4, kind: input, shape index: {}]
  %s5 = inlined_call_operand.vmem [shape: f32[1,32], index: 5, kind: input, shape index: {}]
  %s6 = inlined_call_operand.vmem [shape: f32[1,32], index: 6, kind: input, shape index: {}]
  %s7 = inlined_call_operand.vmem [shape: f32[32,6], index: 7, kind: input, shape index: {}]
  %s8 = inlined_call_operand.vmem [shape: f32[1,6], index: 8, kind: input, shape index: {}]
  %s9 = inlined_call_operand.vmem [shape: bf16[32,384], index: 9, kind: input, shape index: {}]
  %s10 = inlined_call_operand.vmem [shape: f32[1,384], index: 10, kind: input, shape index: {}]
  %s11 = inlined_call_operand.vmem [shape: bf16[384,32], index: 11, kind: input, shape index: {}]
  %s12 = inlined_call_operand.vmem [shape: f32[6,32], index: 12, kind: input, shape index: {}]
  %s13 = inlined_call_operand.vmem [shape: bf16[32,32], index: 13, kind: input, shape index: {}]
  %s14 = inlined_call_operand.vmem [shape: f32[1,32], index: 14, kind: input, shape index: {}]
  %s15 = inlined_call_operand.vmem [shape: f32[1,32], index: 15, kind: input, shape index: {}]
  %s16 = inlined_call_operand.vmem [shape: f32[1,32], index: 16, kind: input, shape index: {}]
  %s17 = inlined_call_operand.hbm [shape: f32[2,8,32], index: 17, kind: output, shape index: {}]
  %s18 = sld [smem:[#allocation0]]
  $region101: #{tpu_custom_call.1} parent=0
    _
  %s20 = ssub.s32 1, %s18
  %s21 = scalar_select 0, %s20, %s18
  $region1: #{tpu_custom_call.1} parent=0
    #allocation2 [shape = 'u8[8192]{0}', space=vmem, size = 0x2000, scoped, tag = 'output window, operand 0']
    #allocation3 [shape = 's32[2]{0}', space=sflag, size = 0x8, scoped, tag = 'scoped memory for tpu_custom_call.1']
    %22 = vsyncpa [#allocation3], 0
    %s23 = scalar_lea.sflag [#allocation3], 1
    %24 = vsyncpa %s23, 0
    loop: start=0, step=1, limit=4
    $region2: #{tpu_custom_call.1} parent=1 // loop_pre_header
      _
    $region3: #{tpu_custom_call.1} parent=1 // loop_header
      %s26 = sphi 0, %s30
      %p27 = scmp.ge.s32.totalorder %s26, 4
      %s36 = sphi 0, %s38
      %s39 = sphi 0, %s36
      %s40 = sphi 0, %s39
      %s56 = sphi 0, %s40
      %s60 = sphi 0, %s60
      %s62 = sphi 0, %s60
      %s63 = sphi 0, %s62
      %s77 = sphi 0, %s63
      %s81 = sphi 0, %s81
      %s83 = sphi 0, %s81
      %s84 = sphi 0, %s83
      %s98 = sphi 0, %s84
      %s102 = sphi 0, %s102
      %s104 = sphi 0, %s102
      %s105 = sphi 0, %s104
      %s119 = sphi 0, %s105
      %s123 = sphi 0, %s123
      %s125 = sphi 0, %s123
      %s126 = sphi 0, %s125
      %s140 = sphi 0, %s126
      %s144 = sphi 0, %s144
      %s146 = sphi 0, %s144
      %s147 = sphi 0, %s146
      %s161 = sphi 0, %s147
      %s165 = sphi 0, %s165
      %s167 = sphi 0, %s165
      %s168 = sphi 0, %s167
      %s182 = sphi 0, %s168
      %s186 = sphi 0, %s186
      %s188 = sphi 0, %s186
      %s189 = sphi 0, %s188
      %s203 = sphi 0, %s189
      %s207 = sphi 0, %s207
      %s209 = sphi 0, %s207
      %s210 = sphi 0, %s209
      %s224 = sphi 0, %s210
      %s228 = sphi 0, %s228
      %s230 = sphi 0, %s228
      %s231 = sphi 0, %s230
      %s245 = sphi 0, %s231
      %s249 = sphi 0, %s249
      %s251 = sphi 0, %s249
      %s252 = sphi 0, %s251
      %s266 = sphi 0, %s252
      %s270 = sphi 0, %s270
      %s272 = sphi 0, %s270
      %s273 = sphi 0, %s272
      %s287 = sphi 0, %s273
      %s291 = sphi 0, %s291
      %s293 = sphi 0, %s291
      %s294 = sphi 0, %s293
      %s308 = sphi 0, %s294
      %s312 = sphi 0, %s312
      %s314 = sphi 0, %s312
      %s315 = sphi 0, %s314
      %s329 = sphi 0, %s315
      %s333 = sphi 0, %s333
      %s335 = sphi 0, %s333
      %s336 = sphi 0, %s335
      %s350 = sphi 0, %s336
      %s354 = sphi 0, %s354
      %s356 = sphi 0, %s354
      %s357 = sphi 0, %s356
      %s371 = sphi 0, %s357
      %s375 = sphi 0, %s375
      %s377 = sphi 0, %s375
      %s378 = sphi 0, %s377
      %s392 = sphi 0, %s378
      %s398 = sphi 0, %s400
      %s401 = sphi 0, %s398
      %s402 = sphi 0, %s401
      %s418 = sphi 0, %s402
    $region4: #{tpu_custom_call.1} parent=1 // loop_header_branch
      %29 = sbr.rel (%p27) target = $region8
    $region5: #{tpu_custom_call.1} parent=1 // loop_body
      %s31 = ssub.s32 %s26, 1
      %s32 = ssub.s32 %s26, 2
      %s33 = sadd.s32 %s26, 1
      %s34 = ssub.s32 %s26, %s33
      %p35 = scmp.eq.s32.totalorder %s34, 0
      %s37 = sadd.s32 %s36, 1
      %s38 = scalar_select %p35, %s36, %s37
      %p41 = pneg %p35
      %p42 = scmp.eq.s32.totalorder %s26, 1
      %p43 = por %p41, %p42
      %p44 = scmp.ne.s32.totalorder %s36, %s39
      %p45 = scmp.eq.s32.totalorder %s26, 0
      %p46 = por %p44, %p45
      %p47 = scmp.ne.s32.totalorder %s36, %s39
      %p48 = scmp.eq.s32.totalorder %s31, 1
      %p49 = por %p47, %p48
      %p50 = scmp.ne.s32.totalorder %s39, %s40
      %p51 = scmp.eq.s32.totalorder %s31, 0
      %p52 = por %p50, %p51
      %p53 = scmp.ne.s32.totalorder %s39, %s40
      %p54 = scmp.eq.s32.totalorder %s32, 1
      %p55 = por %p53, %p54
      %p57 = scmp.ne.s32.totalorder %s40, %s56
      %p58 = scmp.eq.s32.totalorder %s32, 0
      %p59 = por %p57, %p58
      %s61 = sadd.s32 %s60, 1
      %p64 = scmp.eq.s32.totalorder %s26, 1
      %p65 = scmp.ne.s32.totalorder %s60, %s62
      %p66 = scmp.eq.s32.totalorder %s26, 0
      %p67 = por %p65, %p66
      %p68 = scmp.ne.s32.totalorder %s60, %s62
      %p69 = scmp.eq.s32.totalorder %s31, 1
      %p70 = por %p68, %p69
      %p71 = scmp.ne.s32.totalorder %s62, %s63
      %p72 = scmp.eq.s32.totalorder %s31, 0
      %p73 = por %p71, %p72
      %p74 = scmp.ne.s32.totalorder %s62, %s63
      %p75 = scmp.eq.s32.totalorder %s32, 1
      %p76 = por %p74, %p75
      %p78 = scmp.ne.s32.totalorder %s63, %s77
      %p79 = scmp.eq.s32.totalorder %s32, 0
      %p80 = por %p78, %p79
      %s82 = sadd.s32 %s81, 1
      %p85 = scmp.eq.s32.totalorder %s26, 1
      %p86 = scmp.ne.s32.totalorder %s81, %s83
      %p87 = scmp.eq.s32.totalorder %s26, 0
      %p88 = por %p86, %p87
      %p89 = scmp.ne.s32.totalorder %s81, %s83
      %p90 = scmp.eq.s32.totalorder %s31, 1
      %p91 = por %p89, %p90
      %p92 = scmp.ne.s32.totalorder %s83, %s84
      %p93 = scmp.eq.s32.totalorder %s31, 0
      %p94 = por %p92, %p93
      %p95 = scmp.ne.s32.totalorder %s83, %s84
      %p96 = scmp.eq.s32.totalorder %s32, 1
      %p97 = por %p95, %p96
      %p99 = scmp.ne.s32.totalorder %s84, %s98
      %p100 = scmp.eq.s32.totalorder %s32, 0
      %p101 = por %p99, %p100
      %s103 = sadd.s32 %s102, 1
      %p106 = scmp.eq.s32.totalorder %s26, 1
      %p107 = scmp.ne.s32.totalorder %s102, %s104
      %p108 = scmp.eq.s32.totalorder %s26, 0
      %p109 = por %p107, %p108
      %p110 = scmp.ne.s32.totalorder %s102, %s104
      %p111 = scmp.eq.s32.totalorder %s31, 1
      %p112 = por %p110, %p111
      %p113 = scmp.ne.s32.totalorder %s104, %s105
      %p114 = scmp.eq.s32.totalorder %s31, 0
      %p115 = por %p113, %p114
      %p116 = scmp.ne.s32.totalorder %s104, %s105
      %p117 = scmp.eq.s32.totalorder %s32, 1
      %p118 = por %p116, %p117
      %p120 = scmp.ne.s32.totalorder %s105, %s119
      %p121 = scmp.eq.s32.totalorder %s32, 0
      %p122 = por %p120, %p121
      %s124 = sadd.s32 %s123, 1
      %p127 = scmp.eq.s32.totalorder %s26, 1
      %p128 = scmp.ne.s32.totalorder %s123, %s125
      %p129 = scmp.eq.s32.totalorder %s26, 0
      %p130 = por %p128, %p129
      %p131 = scmp.ne.s32.totalorder %s123, %s125
      %p132 = scmp.eq.s32.totalorder %s31, 1
      %p133 = por %p131, %p132
      %p134 = scmp.ne.s32.totalorder %s125, %s126
      %p135 = scmp.eq.s32.totalorder %s31, 0
      %p136 = por %p134, %p135
      %p137 = scmp.ne.s32.totalorder %s125, %s126
      %p138 = scmp.eq.s32.totalorder %s32, 1
      %p139 = por %p137, %p138
      %p141 = scmp.ne.s32.totalorder %s126, %s140
      %p142 = scmp.eq.s32.totalorder %s32, 0
      %p143 = por %p141, %p142
      %s145 = sadd.s32 %s144, 1
      %p148 = scmp.eq.s32.totalorder %s26, 1
      %p149 = scmp.ne.s32.totalorder %s144, %s146
      %p150 = scmp.eq.s32.totalorder %s26, 0
      %p151 = por %p149, %p150
      %p152 = scmp.ne.s32.totalorder %s144, %s146
      %p153 = scmp.eq.s32.totalorder %s31, 1
      %p154 = por %p152, %p153
      %p155 = scmp.ne.s32.totalorder %s146, %s147
      %p156 = scmp.eq.s32.totalorder %s31, 0
      %p157 = por %p155, %p156
      %p158 = scmp.ne.s32.totalorder %s146, %s147
      %p159 = scmp.eq.s32.totalorder %s32, 1
      %p160 = por %p158, %p159
      %p162 = scmp.ne.s32.totalorder %s147, %s161
      %p163 = scmp.eq.s32.totalorder %s32, 0
      %p164 = por %p162, %p163
      %s166 = sadd.s32 %s165, 1
      %p169 = scmp.eq.s32.totalorder %s26, 1
      %p170 = scmp.ne.s32.totalorder %s165, %s167
      %p171 = scmp.eq.s32.totalorder %s26, 0
      %p172 = por %p170, %p171
      %p173 = scmp.ne.s32.totalorder %s165, %s167
      %p174 = scmp.eq.s32.totalorder %s31, 1
      %p175 = por %p173, %p174
      %p176 = scmp.ne.s32.totalorder %s167, %s168
      %p177 = scmp.eq.s32.totalorder %s31, 0
      %p178 = por %p176, %p177
      %p179 = scmp.ne.s32.totalorder %s167, %s168
      %p180 = scmp.eq.s32.totalorder %s32, 1
      %p181 = por %p179, %p180
      %p183 = scmp.ne.s32.totalorder %s168, %s182
      %p184 = scmp.eq.s32.totalorder %s32, 0
      %p185 = por %p183, %p184
      %s187 = sadd.s32 %s186, 1
      %p190 = scmp.eq.s32.totalorder %s26, 1
      %p191 = scmp.ne.s32.totalorder %s186, %s188
      %p192 = scmp.eq.s32.totalorder %s26, 0
      %p193 = por %p191, %p192
      %p194 = scmp.ne.s32.totalorder %s186, %s188
      %p195 = scmp.eq.s32.totalorder %s31, 1
      %p196 = por %p194, %p195
      %p197 = scmp.ne.s32.totalorder %s188, %s189
      %p198 = scmp.eq.s32.totalorder %s31, 0
      %p199 = por %p197, %p198
      %p200 = scmp.ne.s32.totalorder %s188, %s189
      %p201 = scmp.eq.s32.totalorder %s32, 1
      %p202 = por %p200, %p201
      %p204 = scmp.ne.s32.totalorder %s189, %s203
      %p205 = scmp.eq.s32.totalorder %s32, 0
      %p206 = por %p204, %p205
      %s208 = sadd.s32 %s207, 1
      %p211 = scmp.eq.s32.totalorder %s26, 1
      %p212 = scmp.ne.s32.totalorder %s207, %s209
      %p213 = scmp.eq.s32.totalorder %s26, 0
      %p214 = por %p212, %p213
      %p215 = scmp.ne.s32.totalorder %s207, %s209
      %p216 = scmp.eq.s32.totalorder %s31, 1
      %p217 = por %p215, %p216
      %p218 = scmp.ne.s32.totalorder %s209, %s210
      %p219 = scmp.eq.s32.totalorder %s31, 0
      %p220 = por %p218, %p219
      %p221 = scmp.ne.s32.totalorder %s209, %s210
      %p222 = scmp.eq.s32.totalorder %s32, 1
      %p223 = por %p221, %p222
      %p225 = scmp.ne.s32.totalorder %s210, %s224
      %p226 = scmp.eq.s32.totalorder %s32, 0
      %p227 = por %p225, %p226
      %s229 = sadd.s32 %s228, 1
      %p232 = scmp.eq.s32.totalorder %s26, 1
      %p233 = scmp.ne.s32.totalorder %s228, %s230
      %p234 = scmp.eq.s32.totalorder %s26, 0
      %p235 = por %p233, %p234
      %p236 = scmp.ne.s32.totalorder %s228, %s230
      %p237 = scmp.eq.s32.totalorder %s31, 1
      %p238 = por %p236, %p237
      %p239 = scmp.ne.s32.totalorder %s230, %s231
      %p240 = scmp.eq.s32.totalorder %s31, 0
      %p241 = por %p239, %p240
      %p242 = scmp.ne.s32.totalorder %s230, %s231
      %p243 = scmp.eq.s32.totalorder %s32, 1
      %p244 = por %p242, %p243
      %p246 = scmp.ne.s32.totalorder %s231, %s245
      %p247 = scmp.eq.s32.totalorder %s32, 0
      %p248 = por %p246, %p247
      %s250 = sadd.s32 %s249, 1
      %p253 = scmp.eq.s32.totalorder %s26, 1
      %p254 = scmp.ne.s32.totalorder %s249, %s251
      %p255 = scmp.eq.s32.totalorder %s26, 0
      %p256 = por %p254, %p255
      %p257 = scmp.ne.s32.totalorder %s249, %s251
      %p258 = scmp.eq.s32.totalorder %s31, 1
      %p259 = por %p257, %p258
      %p260 = scmp.ne.s32.totalorder %s251, %s252
      %p261 = scmp.eq.s32.totalorder %s31, 0
      %p262 = por %p260, %p261
      %p263 = scmp.ne.s32.totalorder %s251, %s252
      %p264 = scmp.eq.s32.totalorder %s32, 1
      %p265 = por %p263, %p264
      %p267 = scmp.ne.s32.totalorder %s252, %s266
      %p268 = scmp.eq.s32.totalorder %s32, 0
      %p269 = por %p267, %p268
      %s271 = sadd.s32 %s270, 1
      %p274 = scmp.eq.s32.totalorder %s26, 1
      %p275 = scmp.ne.s32.totalorder %s270, %s272
      %p276 = scmp.eq.s32.totalorder %s26, 0
      %p277 = por %p275, %p276
      %p278 = scmp.ne.s32.totalorder %s270, %s272
      %p279 = scmp.eq.s32.totalorder %s31, 1
      %p280 = por %p278, %p279
      %p281 = scmp.ne.s32.totalorder %s272, %s273
      %p282 = scmp.eq.s32.totalorder %s31, 0
      %p283 = por %p281, %p282
      %p284 = scmp.ne.s32.totalorder %s272, %s273
      %p285 = scmp.eq.s32.totalorder %s32, 1
      %p286 = por %p284, %p285
      %p288 = scmp.ne.s32.totalorder %s273, %s287
      %p289 = scmp.eq.s32.totalorder %s32, 0
      %p290 = por %p288, %p289
      %s292 = sadd.s32 %s291, 1
      %p295 = scmp.eq.s32.totalorder %s26, 1
      %p296 = scmp.ne.s32.totalorder %s291, %s293
      %p297 = scmp.eq.s32.totalorder %s26, 0
      %p298 = por %p296, %p297
      %p299 = scmp.ne.s32.totalorder %s291, %s293
      %p300 = scmp.eq.s32.totalorder %s31, 1
      %p301 = por %p299, %p300
      %p302 = scmp.ne.s32.totalorder %s293, %s294
      %p303 = scmp.eq.s32.totalorder %s31, 0
      %p304 = por %p302, %p303
      %p305 = scmp.ne.s32.totalorder %s293, %s294
      %p306 = scmp.eq.s32.totalorder %s32, 1
      %p307 = por %p305, %p306
      %p309 = scmp.ne.s32.totalorder %s294, %s308
      %p310 = scmp.eq.s32.totalorder %s32, 0
      %p311 = por %p309, %p310
      %s313 = sadd.s32 %s312, 1
      %p316 = scmp.eq.s32.totalorder %s26, 1
      %p317 = scmp.ne.s32.totalorder %s312, %s314
      %p318 = scmp.eq.s32.totalorder %s26, 0
      %p319 = por %p317, %p318
      %p320 = scmp.ne.s32.totalorder %s312, %s314
      %p321 = scmp.eq.s32.totalorder %s31, 1
      %p322 = por %p320, %p321
      %p323 = scmp.ne.s32.totalorder %s314, %s315
      %p324 = scmp.eq.s32.totalorder %s31, 0
      %p325 = por %p323, %p324
      %p326 = scmp.ne.s32.totalorder %s314, %s315
      %p327 = scmp.eq.s32.totalorder %s32, 1
      %p328 = por %p326, %p327
      %p330 = scmp.ne.s32.totalorder %s315, %s329
      %p331 = scmp.eq.s32.totalorder %s32, 0
      %p332 = por %p330, %p331
      %s334 = sadd.s32 %s333, 1
      %p337 = scmp.eq.s32.totalorder %s26, 1
      %p338 = scmp.ne.s32.totalorder %s333, %s335
      %p339 = scmp.eq.s32.totalorder %s26, 0
      %p340 = por %p338, %p339
      %p341 = scmp.ne.s32.totalorder %s333, %s335
      %p342 = scmp.eq.s32.totalorder %s31, 1
      %p343 = por %p341, %p342
      %p344 = scmp.ne.s32.totalorder %s335, %s336
      %p345 = scmp.eq.s32.totalorder %s31, 0
      %p346 = por %p344, %p345
      %p347 = scmp.ne.s32.totalorder %s335, %s336
      %p348 = scmp.eq.s32.totalorder %s32, 1
      %p349 = por %p347, %p348
      %p351 = scmp.ne.s32.totalorder %s336, %s350
      %p352 = scmp.eq.s32.totalorder %s32, 0
      %p353 = por %p351, %p352
      %s355 = sadd.s32 %s354, 1
      %p358 = scmp.eq.s32.totalorder %s26, 1
      %p359 = scmp.ne.s32.totalorder %s354, %s356
      %p360 = scmp.eq.s32.totalorder %s26, 0
      %p361 = por %p359, %p360
      %p362 = scmp.ne.s32.totalorder %s354, %s356
      %p363 = scmp.eq.s32.totalorder %s31, 1
      %p364 = por %p362, %p363
      %p365 = scmp.ne.s32.totalorder %s356, %s357
      %p366 = scmp.eq.s32.totalorder %s31, 0
      %p367 = por %p365, %p366
      %p368 = scmp.ne.s32.totalorder %s356, %s357
      %p369 = scmp.eq.s32.totalorder %s32, 1
      %p370 = por %p368, %p369
      %p372 = scmp.ne.s32.totalorder %s357, %s371
      %p373 = scmp.eq.s32.totalorder %s32, 0
      %p374 = por %p372, %p373
      %s376 = sadd.s32 %s375, 1
      %p379 = scmp.eq.s32.totalorder %s26, 1
      %p380 = scmp.ne.s32.totalorder %s375, %s377
      %p381 = scmp.eq.s32.totalorder %s26, 0
      %p382 = por %p380, %p381
      %p383 = scmp.ne.s32.totalorder %s375, %s377
      %p384 = scmp.eq.s32.totalorder %s31, 1
      %p385 = por %p383, %p384
      %p386 = scmp.ne.s32.totalorder %s377, %s378
      %p387 = scmp.eq.s32.totalorder %s31, 0
      %p388 = por %p386, %p387
      %p389 = scmp.ne.s32.totalorder %s377, %s378
      %p390 = scmp.eq.s32.totalorder %s32, 1
      %p391 = por %p389, %p390
      %p393 = scmp.ne.s32.totalorder %s378, %s392
      %p394 = scmp.eq.s32.totalorder %s32, 0
      %p395 = por %p393, %p394
      %s396 = ssub.s32 %s26, %s33
      %p397 = scmp.eq.s32.totalorder %s396, 0
      %s399 = sadd.s32 %s398, 1
      %s400 = scalar_select %p397, %s398, %s399
      %p403 = pneg %p397
      %p404 = scmp.eq.s32.totalorder %s26, 1
      %p405 = por %p403, %p404
      %p406 = scmp.ne.s32.totalorder %s398, %s401
      %p407 = scmp.eq.s32.totalorder %s26, 0
      %p408 = por %p406, %p407
      %p409 = scmp.ne.s32.totalorder %s398, %s401
      %p410 = scmp.eq.s32.totalorder %s31, 1
      %p411 = por %p409, %p410
      %p412 = scmp.ne.s32.totalorder %s401, %s402
      %p413 = scmp.eq.s32.totalorder %s31, 0
      %p414 = por %p412, %p413
      %p415 = scmp.ne.s32.totalorder %s401, %s402
      %p416 = scmp.eq.s32.totalorder %s32, 1
      %p417 = por %p415, %p416
      %p419 = scmp.ne.s32.totalorder %s402, %s418
      %p420 = scmp.eq.s32.totalorder %s32, 0
      %p421 = por %p419, %p420
      %p422 = scmp.le.s32.totalorder 1, %s26
      %p423 = scmp.lt.s32.totalorder %s26, 3
      %p424 = pnand %p422, %p423
      %p425 = pneg %p424
      // Predicated region
      $region9: #{tpu_custom_call.1} parent=5 // pred_check
        _
      $region10: #{tpu_custom_call.1} parent=5 // pred_check_branch
        %427 = sbr.rel (%p424) target = $region12
      $region11: #{tpu_custom_call.1} parent=5 // pred_region
        %s428 = ssub.s32 %s26, 1
        // Predicated region
        $region13: #{tpu_custom_call.1} parent=11 // pred_check
          %p429 = pneg %p73
        $region14: #{tpu_custom_call.1} parent=11 // pred_check_branch
          %431 = sbr.rel (%p429) target = $region16
        $region15: #{tpu_custom_call.1} parent=11 // pred_region
          _
        $region16: #{tpu_custom_call.1} parent=11 // pred_fallthru
          _
        // Predicated region
        $region17: #{tpu_custom_call.1} parent=11 // pred_check
          %p432 = pneg %p94
        $region18: #{tpu_custom_call.1} parent=11 // pred_check_branch
          %434 = sbr.rel (%p432) target = $region20
        $region19: #{tpu_custom_call.1} parent=11 // pred_region
          _
        $region20: #{tpu_custom_call.1} parent=11 // pred_fallthru
          _
        // Predicated region
        $region21: #{tpu_custom_call.1} parent=11 // pred_check
          %p435 = pneg %p115
        $region22: #{tpu_custom_call.1} parent=11 // pred_check_branch
          %437 = sbr.rel (%p435) target = $region24
        $region23: #{tpu_custom_call.1} parent=11 // pred_region
          _
        $region24: #{tpu_custom_call.1} parent=11 // pred_fallthru
          _
        // Predicated region
        $region25: #{tpu_custom_call.1} parent=11 // pred_check
          %p438 = pneg %p136
        $region26: #{tpu_custom_call.1} parent=11 // pred_check_branch
          %440 = sbr.rel (%p438) target = $region28
        $region27: #{tpu_custom_call.1} parent=11 // pred_region
          _
        $region28: #{tpu_custom_call.1} parent=11 // pred_fallthru
          _
        // Predicated region
        $region29: #{tpu_custom_call.1} parent=11 // pred_check
          %p441 = pneg %p157
        $region30: #{tpu_custom_call.1} parent=11 // pred_check_branch
          %443 = sbr.rel (%p441) target = $region32
        $region31: #{tpu_custom_call.1} parent=11 // pred_region
          _
        $region32: #{tpu_custom_call.1} parent=11 // pred_fallthru
          _
        // Predicated region
        $region33: #{tpu_custom_call.1} parent=11 // pred_check
          %p444 = pneg %p178
        $region34: #{tpu_custom_call.1} parent=11 // pred_check_branch
          %446 = sbr.rel (%p444) target = $region36
        $region35: #{tpu_custom_call.1} parent=11 // pred_region
          _
        $region36: #{tpu_custom_call.1} parent=11 // pred_fallthru
          _
        // Predicated region
        $region37: #{tpu_custom_call.1} parent=11 // pred_check
          %p447 = pneg %p199
        $region38: #{tpu_custom_call.1} parent=11 // pred_check_branch
          %449 = sbr.rel (%p447) target = $region40
        $region39: #{tpu_custom_call.1} parent=11 // pred_region
          _
        $region40: #{tpu_custom_call.1} parent=11 // pred_fallthru
          _
        // Predicated region
        $region41: #{tpu_custom_call.1} parent=11 // pred_check
          %p450 = pneg %p220
        $region42: #{tpu_custom_call.1} parent=11 // pred_check_branch
          %452 = sbr.rel (%p450) target = $region44
        $region43: #{tpu_custom_call.1} parent=11 // pred_region
          _
        $region44: #{tpu_custom_call.1} parent=11 // pred_fallthru
          _
        // Predicated region
        $region45: #{tpu_custom_call.1} parent=11 // pred_check
          %p453 = pneg %p241
        $region46: #{tpu_custom_call.1} parent=11 // pred_check_branch
          %455 = sbr.rel (%p453) target = $region48
        $region47: #{tpu_custom_call.1} parent=11 // pred_region
          _
        $region48: #{tpu_custom_call.1} parent=11 // pred_fallthru
          _
        // Predicated region
        $region49: #{tpu_custom_call.1} parent=11 // pred_check
          %p456 = pneg %p262
        $region50: #{tpu_custom_call.1} parent=11 // pred_check_branch
          %458 = sbr.rel (%p456) target = $region52
        $region51: #{tpu_custom_call.1} parent=11 // pred_region
          _
        $region52: #{tpu_custom_call.1} parent=11 // pred_fallthru
          _
        // Predicated region
        $region53: #{tpu_custom_call.1} parent=11 // pred_check
          %p459 = pneg %p283
        $region54: #{tpu_custom_call.1} parent=11 // pred_check_branch
          %461 = sbr.rel (%p459) target = $region56
        $region55: #{tpu_custom_call.1} parent=11 // pred_region
          _
        $region56: #{tpu_custom_call.1} parent=11 // pred_fallthru
          _
        // Predicated region
        $region57: #{tpu_custom_call.1} parent=11 // pred_check
          %p462 = pneg %p304
        $region58: #{tpu_custom_call.1} parent=11 // pred_check_branch
          %464 = sbr.rel (%p462) target = $region60
        $region59: #{tpu_custom_call.1} parent=11 // pred_region
          _
        $region60: #{tpu_custom_call.1} parent=11 // pred_fallthru
          _
        // Predicated region
        $region61: #{tpu_custom_call.1} parent=11 // pred_check
          %p465 = pneg %p325
        $region62: #{tpu_custom_call.1} parent=11 // pred_check_branch
          %467 = sbr.rel (%p465) target = $region64
        $region63: #{tpu_custom_call.1} parent=11 // pred_region
          _
        $region64: #{tpu_custom_call.1} parent=11 // pred_fallthru
          _
        // Predicated region
        $region65: #{tpu_custom_call.1} parent=11 // pred_check
          %p468 = pneg %p346
        $region66: #{tpu_custom_call.1} parent=11 // pred_check_branch
          %470 = sbr.rel (%p468) target = $region68
        $region67: #{tpu_custom_call.1} parent=11 // pred_region
          _
        $region68: #{tpu_custom_call.1} parent=11 // pred_fallthru
          _
        // Predicated region
        $region69: #{tpu_custom_call.1} parent=11 // pred_check
          %p471 = pneg %p367
        $region70: #{tpu_custom_call.1} parent=11 // pred_check_branch
          %473 = sbr.rel (%p471) target = $region72
        $region71: #{tpu_custom_call.1} parent=11 // pred_region
          _
        $region72: #{tpu_custom_call.1} parent=11 // pred_fallthru
          _
        // Predicated region
        $region73: #{tpu_custom_call.1} parent=11 // pred_check
          %p474 = pneg %p388
        $region74: #{tpu_custom_call.1} parent=11 // pred_check_branch
          %476 = sbr.rel (%p474) target = $region76
        $region75: #{tpu_custom_call.1} parent=11 // pred_region
          _
        $region76: #{tpu_custom_call.1} parent=11 // pred_fallthru
          _
      $region12: #{tpu_custom_call.1} parent=5 // pred_fallthru
        _
      %p477 = scmp.lt.s32.totalorder %s26, 2
      // Predicated region
      $region77: #{tpu_custom_call.1} parent=5 // pred_check
        %p478 = pneg %p477
      $region78: #{tpu_custom_call.1} parent=5 // pred_check_branch
        %480 = sbr.rel (%p478) target = $region80
      $region79: #{tpu_custom_call.1} parent=5 // pred_region
        // Predicated region
        $region81: #{tpu_custom_call.1} parent=79 // pred_check
          %p481 = pneg %p46
        $region82: #{tpu_custom_call.1} parent=79 // pred_check_branch
          %483 = sbr.rel (%p481) target = $region84
        $region83: #{tpu_custom_call.1} parent=79 // pred_region
          %p484 = scmp.lt.s32.totalorder %s26, 1
          %s485 = scalar_select %p484, %s26, 1
          %s486 = smul.addr %s485, 8
          %s487 = scalar_lea.vmem %s0, %s486
        $region84: #{tpu_custom_call.1} parent=79 // pred_fallthru
          _
      $region80: #{tpu_custom_call.1} parent=5 // pred_fallthru
        _
      %p488 = scmp.le.s32.totalorder 1, %s26
      %p489 = scmp.lt.s32.totalorder %s26, 3
      %p490 = pnand %p488, %p489
      %p491 = pneg %p490
      // Predicated region
      $region85: #{tpu_custom_call.1} parent=5 // pred_check
        _
      $region86: #{tpu_custom_call.1} parent=5 // pred_check_branch
        %493 = sbr.rel (%p490) target = $region88
      $region87: #{tpu_custom_call.1} parent=5 // pred_region
        %s494 = ssub.s32 %s26, 1
        %p495 = scmp.lt.s32.totalorder %s31, 1
        %s496 = scalar_select %p495, %s31, 1
        %s497 = smul.addr %s496, 8
        %s498 = scalar_lea.vmem %s0, %s497
        %p499 = pneg %p52
        %p500 = pneg %p49
        %p501 = pneg %p73
        %p502 = pneg %p70
        %p503 = pneg %p94
        %p504 = pneg %p91
        %p505 = pneg %p115
        %p506 = pneg %p112
        %p507 = pneg %p136
        %p508 = pneg %p133
        %p509 = pneg %p157
        %p510 = pneg %p154
        %p511 = pneg %p178
        %p512 = pneg %p175
        %p513 = pneg %p199
        %p514 = pneg %p196
        %p515 = pneg %p220
        %p516 = pneg %p217
        %p517 = pneg %p241
        %p518 = pneg %p238
        %p519 = pneg %p262
        %p520 = pneg %p259
        %p521 = pneg %p283
        %p522 = pneg %p280
        %p523 = pneg %p304
        %p524 = pneg %p301
        %p525 = pneg %p325
        %p526 = pneg %p322
        %p527 = pneg %p346
        %p528 = pneg %p343
        %p529 = pneg %p367
        %p530 = pneg %p364
        %p531 = pneg %p388
        %p532 = pneg %p385
        %p533 = pneg %p414
        %p534 = pneg %p411
        %s535 = sand.u32 %s401, 1
        %s536 = scalar_lea.sflag [#allocation3], %s535
        %s537 = sand.u32 %s401, 1
        %s538 = smul.addr %s537, 8
        %s539 = scalar_lea.vmem [#allocation2], %s538
        %p540 = scmp.lt.s32.totalorder %s31, 1
        %s541 = scalar_select %p540, %s31, 1
        %s542 = smul.addr %s541, 8
        %s543 = scalar_lea.vmem %s0, %s542
        %v545 = vld [vmem:[%s543] sm:$0xff]
        %v546 = vpack.c.bf16 %v545, %v545
        %v547 = vld [vmem:[%s1] sm:$0xf]
        %v548 = vld [vmem:[%s1 + $0x4] sm:$0xf]
        %v549 = vld [vmem:[%s1 + $0x8] sm:$0xf]
        %v550 = vld [vmem:[%s1 + $0xc] sm:$0xf]
        %v551 = vld [vmem:[%s2] sm:$0x1]
        %v553 = vlaneseq
        %v554 = vshrl.u32 %v553, 7
        %v555 = vsub.s32 0, %v554
        %v556 = vrot.slane %v551, %v555
        %v562 = vunpack.c.l.b16 %v547
        %v563 = vunpack.c.l.b16 %v548
        %v564 = vunpack.c.l.b16 %v549
        %v565 = vunpack.c.l.b16 %v550
        %v566 = vpack.c.b16 %v563, %v562
        %v567 = vpack.c.b16 %v565, %v564
        %vm570 = vcmask 261120
        %v572 = vsel %vm570, %v546, 0
        %574 = vmatprep.subr.bf16.mxu0 0
        %575 = vmatpush1.bf16.msra.mxu0 0
        %576 = vmatprep.subr.bf16.mxu0 0
        %577 = vmatpush1.bf16.msra.mxu0 0
        %578 = vmatprep.subr.bf16.mxu0 0
        %579 = vmatpush1.bf16.msra.mxu0 0
        %580 = vmatprep.subr.bf16.mxu0 0
        %581 = vmatpush1.bf16.msra.mxu0 0
        %582 = vmatprep.subr.bf16.mxu0 0
        %583 = vmatpush1.bf16.msra.mxu0 0
        %584 = vmatprep.subr.bf16.mxu0 0
        %585 = vmatpush1.bf16.msra.mxu0 0
        %586 = vmatprep.subr.bf16.mxu0 0
        %587 = vmatpush1.bf16.msra.mxu0 %v567
        %588 = vmatprep.subr.bf16.mxu0 0
        %589 = vmatpush1.bf16.msra.mxu0 %v566
        %590 = vmatprep.subr.bf16.mxu0 0
        %591 = vmatpush2.bf16.msra.mxu0 0
        %592 = vmatprep.subr.bf16.mxu0 0
        %593 = vmatpush2.bf16.msra.mxu0 0
        %594 = vmatprep.subr.bf16.mxu0 0
        %595 = vmatpush2.bf16.msra.mxu0 0
        %596 = vmatprep.subr.bf16.mxu0 0
        %597 = vmatpush2.bf16.msra.mxu0 0
        %598 = vmatprep.subr.bf16.mxu0 0
        %599 = vmatpush2.bf16.msra.mxu0 0
        %600 = vmatprep.subr.bf16.mxu0 0
        %601 = vmatpush2.bf16.msra.mxu0 0
        %602 = vmatprep.subr.bf16.mxu0 0
        %603 = vmatpush2.bf16.msra.mxu0 0
        %604 = vmatprep.subr.bf16.mxu0 0
        %605 = vmatpush2.bf16.msra.mxu0 0
        %606 = vmatprep.mubr.bf16.mxu0 0
        %607 = vmatmul.mubr.bf16.gmra.mxu0 %v572
        %v608 = vpop.f32.mrf.mxu0
        %v609 = vadd.f32 %v556, %v608
        %v610 = vpop.f32.mrf.mxu0
        %v611 = vpop.f32.mrf.mxu0
        %v612 = vpop.f32.mrf.mxu0
        %613 = vdwg.mxu0
        %615 = vrot.lane.b32.xlu0 %v609, 120
        %v616 = vpop.permute.xlu0 %615
        %618 = vrot.lane.b32.xlu0 %v609, 112
        %v619 = vpop.permute.xlu0 %618
        %621 = vrot.lane.b32.xlu0 %v609, 104
        %v622 = vpop.permute.xlu0 %621
        %624 = vrot.lane.b32.xlu0 %v609, 96
        %v625 = vpop.permute.xlu0 %624
        %627 = vrot.lane.b32.xlu0 %v609, 88
        %v628 = vpop.permute.xlu0 %627
        %630 = vrot.lane.b32.xlu0 %v609, 80
        %v631 = vpop.permute.xlu0 %630
        %633 = vrot.lane.b32.xlu0 %v609, 72
        %v634 = vpop.permute.xlu0 %633
        %636 = vrot.lane.b32.xlu0 %v609, 64
        %v637 = vpop.permute.xlu0 %636
        %639 = vrot.lane.b32.xlu0 %v609, 56
        %v640 = vpop.permute.xlu0 %639
        %642 = vrot.lane.b32.xlu0 %v609, 48
        %v643 = vpop.permute.xlu0 %642
        %645 = vrot.lane.b32.xlu0 %v609, 40
        %v646 = vpop.permute.xlu0 %645
        %v648 = vcombine.low %v609, %v619
        %v649 = vcombine.high %v609, %v619
        %v651 = vunpack.c.l.s4 1983009808
        %v652 = vunpack.c.0.s8 %v651
        %v653 = vlaneseq
        %v654 = vshrl.u32 %v653, 7
        %v655 = vsub.s32 %v652, %v654
        %v656 = vrot.slane %v648, %v655
        %v658 = vunpack.c.l.s4 1983009808
        %v659 = vunpack.c.0.s8 %v658
        %v660 = vlaneseq
        %v661 = vshrl.u32 %v660, 7
        %v662 = vsub.s32 %v659, %v661
        %v663 = vrot.slane %v649, %v662
        %v664 = vcombine.low %v616, %v622
        %v665 = vcombine.high %v616, %v622
        %v667 = vunpack.c.l.s4 1983009808
        %v668 = vunpack.c.0.s8 %v667
        %v669 = vlaneseq
        %v670 = vshrl.u32 %v669, 7
        %v671 = vsub.s32 %v668, %v670
        %v672 = vrot.slane %v664, %v671
        %v674 = vunpack.c.l.s4 1983009808
        %v675 = vunpack.c.0.s8 %v674
        %v676 = vlaneseq
        %v677 = vshrl.u32 %v676, 7
        %v678 = vsub.s32 %v675, %v677
        %v679 = vrot.slane %v665, %v678
        %v680 = vcombine.low %v625, %v631
        %v681 = vcombine.high %v625, %v631
        %v683 = vunpack.c.l.s4 1983009808
        %v684 = vunpack.c.0.s8 %v683
        %v685 = vlaneseq
        %v686 = vshrl.u32 %v685, 7
        %v687 = vsub.s32 %v684, %v686
        %v688 = vrot.slane %v680, %v687
        %v690 = vunpack.c.l.s4 1983009808
        %v691 = vunpack.c.0.s8 %v690
        %v692 = vlaneseq
        %v693 = vshrl.u32 %v692, 7
        %v694 = vsub.s32 %v691, %v693
        %v695 = vrot.slane %v681, %v694
        %v696 = vcombine.low %v628, %v634
        %v697 = vcombine.high %v628, %v634
        %v699 = vunpack.c.l.s4 1983009808
        %v700 = vunpack.c.0.s8 %v699
        %v701 = vlaneseq
        %v702 = vshrl.u32 %v701, 7
        %v703 = vsub.s32 %v700, %v702
        %v704 = vrot.slane %v696, %v703
        %v706 = vunpack.c.l.s4 1983009808
        %v707 = vunpack.c.0.s8 %v706
        %v708 = vlaneseq
        %v709 = vshrl.u32 %v708, 7
        %v710 = vsub.s32 %v707, %v709
        %v711 = vrot.slane %v697, %v710
        %v712 = vcombine.low %v656, %v672
        %v713 = vcombine.high %v656, %v672
        %v715 = vunpack.c.l.s4 1934713408
        %v716 = vunpack.c.0.s8 %v715
        %v717 = vlaneseq
        %v718 = vshrl.u32 %v717, 7
        %v719 = vsub.s32 %v716, %v718
        %v720 = vrot.slane %v712, %v719
        %v722 = vunpack.c.l.s4 1934713408
        %v723 = vunpack.c.0.s8 %v722
        %v724 = vlaneseq
        %v725 = vshrl.u32 %v724, 7
        %v726 = vsub.s32 %v723, %v725
        %v727 = vrot.slane %v713, %v726
        %v728 = vcombine.low %v663, %v679
        %v729 = vcombine.high %v663, %v679
        %v731 = vunpack.c.l.s4 1934713408
        %v732 = vunpack.c.0.s8 %v731
        %v733 = vlaneseq
        %v734 = vshrl.u32 %v733, 7
        %v735 = vsub.s32 %v732, %v734
        %v736 = vrot.slane %v728, %v735
        %v738 = vunpack.c.l.s4 1934713408
        %v739 = vunpack.c.0.s8 %v738
        %v740 = vlaneseq
        %v741 = vshrl.u32 %v740, 7
        %v742 = vsub.s32 %v739, %v741
        %v743 = vrot.slane %v729, %v742
        %v744 = vcombine.low %v688, %v704
        %v745 = vcombine.high %v688, %v704
        %v747 = vunpack.c.l.s4 1934713408
        %v748 = vunpack.c.0.s8 %v747
        %v749 = vlaneseq
        %v750 = vshrl.u32 %v749, 7
        %v751 = vsub.s32 %v748, %v750
        %v752 = vrot.slane %v744, %v751
        %v754 = vunpack.c.l.s4 1934713408
        %v755 = vunpack.c.0.s8 %v754
        %v756 = vlaneseq
        %v757 = vshrl.u32 %v756, 7
        %v758 = vsub.s32 %v755, %v757
        %v759 = vrot.slane %v745, %v758
        %v760 = vcombine.low %v695, %v711
        %v761 = vcombine.high %v695, %v711
        %v763 = vunpack.c.l.s4 1934713408
        %v764 = vunpack.c.0.s8 %v763
        %v765 = vlaneseq
        %v766 = vshrl.u32 %v765, 7
        %v767 = vsub.s32 %v764, %v766
        %v768 = vrot.slane %v760, %v767
        %v770 = vunpack.c.l.s4 1934713408
        %v771 = vunpack.c.0.s8 %v770
        %v772 = vlaneseq
        %v773 = vshrl.u32 %v772, 7
        %v774 = vsub.s32 %v771, %v773
        %v775 = vrot.slane %v761, %v774
        %v776 = vcombine.low %v720, %v752
        %v777 = vcombine.high %v720, %v752
        %v778 = vcombine.low %v727, %v759
        %v779 = vcombine.high %v727, %v759
        %v780 = vcombine.low %v736, %v768
        %v781 = vcombine.high %v736, %v768
        %v782 = vcombine.low %v743, %v775
        %v783 = vcombine.high %v743, %v775
        %v784 = vcombine.low %v637, %v643
        %v785 = vcombine.high %v637, %v643
        %v787 = vunpack.c.l.s4 1983009808
        %v788 = vunpack.c.0.s8 %v787
        %v789 = vlaneseq
        %v790 = vshrl.u32 %v789, 7
        %v791 = vsub.s32 %v788, %v790
        %v792 = vrot.slane %v784, %v791
        %v794 = vunpack.c.l.s4 1983009808
        %v795 = vunpack.c.0.s8 %v794
        %v796 = vlaneseq
        %v797 = vshrl.u32 %v796, 7
        %v798 = vsub.s32 %v795, %v797
        %v799 = vrot.slane %v785, %v798
        %v800 = vcombine.low %v640, %v646
        %v801 = vcombine.high %v640, %v646
        %v803 = vunpack.c.l.s4 1983009808
        %v804 = vunpack.c.0.s8 %v803
        %v805 = vlaneseq
        %v806 = vshrl.u32 %v805, 7
        %v807 = vsub.s32 %v804, %v806
        %v808 = vrot.slane %v800, %v807
        %v810 = vunpack.c.l.s4 1983009808
        %v811 = vunpack.c.0.s8 %v810
        %v812 = vlaneseq
        %v813 = vshrl.u32 %v812, 7
        %v814 = vsub.s32 %v811, %v813
        %v815 = vrot.slane %v801, %v814
        %v816 = vcombine.low %v792, %v808
        %v817 = vcombine.high %v792, %v808
        %v819 = vunpack.c.l.s4 1934713408
        %v820 = vunpack.c.0.s8 %v819
        %v821 = vlaneseq
        %v822 = vshrl.u32 %v821, 7
        %v823 = vsub.s32 %v820, %v822
        %v824 = vrot.slane %v816, %v823
        %v826 = vunpack.c.l.s4 1934713408
        %v827 = vunpack.c.0.s8 %v826
        %v828 = vlaneseq
        %v829 = vshrl.u32 %v828, 7
        %v830 = vsub.s32 %v827, %v829
        %v831 = vrot.slane %v817, %v830
        %v832 = vcombine.low %v799, %v815
        %v833 = vcombine.high %v799, %v815
        %v835 = vunpack.c.l.s4 1934713408
        %v836 = vunpack.c.0.s8 %v835
        %v837 = vlaneseq
        %v838 = vshrl.u32 %v837, 7
        %v839 = vsub.s32 %v836, %v838
        %v840 = vrot.slane %v832, %v839
        %v842 = vunpack.c.l.s4 1934713408
        %v843 = vunpack.c.0.s8 %v842
        %v844 = vlaneseq
        %v845 = vshrl.u32 %v844, 7
        %v846 = vsub.s32 %v843, %v845
        %v847 = vrot.slane %v833, %v846
        %v848 = vcombine.high %v824, 0.0
        %v849 = vcombine.high %v831, 0.0
        %v850 = vcombine.high %v840, 0.0
        %v851 = vcombine.high %v847, 0.0
        %v852 = vcombine.low %v776, %v778
        %v853 = vcombine.high %v776, %v778
        %v855 = vunpack.c.l.s4 1983009808
        %v856 = vunpack.c.0.s8 %v855
        %v857 = vlaneseq
        %v858 = vshrl.u32 %v857, 7
        %v859 = vsub.s32 %v856, %v858
        %v860 = vrot.slane %v852, %v859
        %v862 = vunpack.c.l.s4 1983009808
        %v863 = vunpack.c.0.s8 %v862
        %v864 = vlaneseq
        %v865 = vshrl.u32 %v864, 7
        %v866 = vsub.s32 %v863, %v865
        %v867 = vrot.slane %v853, %v866
        %v868 = vcombine.low %v777, %v779
        %v869 = vcombine.high %v777, %v779
        %v871 = vunpack.c.l.s4 1983009808
        %v872 = vunpack.c.0.s8 %v871
        %v873 = vlaneseq
        %v874 = vshrl.u32 %v873, 7
        %v875 = vsub.s32 %v872, %v874
        %v876 = vrot.slane %v868, %v875
        %v878 = vunpack.c.l.s4 1983009808
        %v879 = vunpack.c.0.s8 %v878
        %v880 = vlaneseq
        %v881 = vshrl.u32 %v880, 7
        %v882 = vsub.s32 %v879, %v881
        %v883 = vrot.slane %v869, %v882
        %v884 = vcombine.low %v780, %v782
        %v885 = vcombine.high %v780, %v782
        %v887 = vunpack.c.l.s4 1983009808
        %v888 = vunpack.c.0.s8 %v887
        %v889 = vlaneseq
        %v890 = vshrl.u32 %v889, 7
        %v891 = vsub.s32 %v888, %v890
        %v892 = vrot.slane %v884, %v891
        %v894 = vunpack.c.l.s4 1983009808
        %v895 = vunpack.c.0.s8 %v894
        %v896 = vlaneseq
        %v897 = vshrl.u32 %v896, 7
        %v898 = vsub.s32 %v895, %v897
        %v899 = vrot.slane %v885, %v898
        %v900 = vcombine.low %v781, %v783
        %v901 = vcombine.high %v781, %v783
        %v903 = vunpack.c.l.s4 1983009808
        %v904 = vunpack.c.0.s8 %v903
        %v905 = vlaneseq
        %v906 = vshrl.u32 %v905, 7
        %v907 = vsub.s32 %v904, %v906
        %v908 = vrot.slane %v900, %v907
        %v910 = vunpack.c.l.s4 1983009808
        %v911 = vunpack.c.0.s8 %v910
        %v912 = vlaneseq
        %v913 = vshrl.u32 %v912, 7
        %v914 = vsub.s32 %v911, %v913
        %v915 = vrot.slane %v901, %v914
        %v916 = vcombine.low %v860, %v876
        %v917 = vcombine.high %v860, %v876
        %v919 = vunpack.c.l.s4 1934713408
        %v920 = vunpack.c.0.s8 %v919
        %v921 = vlaneseq
        %v922 = vshrl.u32 %v921, 7
        %v923 = vsub.s32 %v920, %v922
        %v924 = vrot.slane %v916, %v923
        %v926 = vunpack.c.l.s4 1934713408
        %v927 = vunpack.c.0.s8 %v926
        %v928 = vlaneseq
        %v929 = vshrl.u32 %v928, 7
        %v930 = vsub.s32 %v927, %v929
        %v931 = vrot.slane %v917, %v930
        %v932 = vcombine.low %v867, %v883
        %v933 = vcombine.high %v867, %v883
        %v935 = vunpack.c.l.s4 1934713408
        %v936 = vunpack.c.0.s8 %v935
        %v937 = vlaneseq
        %v938 = vshrl.u32 %v937, 7
        %v939 = vsub.s32 %v936, %v938
        %v940 = vrot.slane %v932, %v939
        %v942 = vunpack.c.l.s4 1934713408
        %v943 = vunpack.c.0.s8 %v942
        %v944 = vlaneseq
        %v945 = vshrl.u32 %v944, 7
        %v946 = vsub.s32 %v943, %v945
        %v947 = vrot.slane %v933, %v946
        %v948 = vcombine.low %v892, %v908
        %v949 = vcombine.high %v892, %v908
        %v951 = vunpack.c.l.s4 1934713408
        %v952 = vunpack.c.0.s8 %v951
        %v953 = vlaneseq
        %v954 = vshrl.u32 %v953, 7
        %v955 = vsub.s32 %v952, %v954
        %v956 = vrot.slane %v948, %v955
        %v958 = vunpack.c.l.s4 1934713408
        %v959 = vunpack.c.0.s8 %v958
        %v960 = vlaneseq
        %v961 = vshrl.u32 %v960, 7
        %v962 = vsub.s32 %v959, %v961
        %v963 = vrot.slane %v949, %v962
        %v964 = vcombine.low %v899, %v915
        %v965 = vcombine.high %v899, %v915
        %v967 = vunpack.c.l.s4 1934713408
        %v968 = vunpack.c.0.s8 %v967
        %v969 = vlaneseq
        %v970 = vshrl.u32 %v969, 7
        %v971 = vsub.s32 %v968, %v970
        %v972 = vrot.slane %v964, %v971
        %v974 = vunpack.c.l.s4 1934713408
        %v975 = vunpack.c.0.s8 %v974
        %v976 = vlaneseq
        %v977 = vshrl.u32 %v976, 7
        %v978 = vsub.s32 %v975, %v977
        %v979 = vrot.slane %v965, %v978
        %v980 = vcombine.low %v924, %v956
        %v981 = vcombine.high %v924, %v956
        %v982 = vcombine.low %v931, %v963
        %v983 = vcombine.high %v931, %v963
        %v984 = vcombine.low %v940, %v972
        %v985 = vcombine.high %v940, %v972
        %v986 = vcombine.low %v947, %v979
        %v987 = vcombine.high %v947, %v979
        %v988 = vcombine.low %v824, %v831
        %v990 = vunpack.c.l.s4 1983009808
        %v991 = vunpack.c.0.s8 %v990
        %v992 = vlaneseq
        %v993 = vshrl.u32 %v992, 7
        %v994 = vsub.s32 %v991, %v993
        %v995 = vrot.slane %v988, %v994
        %v996 = vcombine.low %v848, %v849
        %v998 = vunpack.c.l.s4 1983009808
        %v999 = vunpack.c.0.s8 %v998
        %v1000 = vlaneseq
        %v1001 = vshrl.u32 %v1000, 7
        %v1002 = vsub.s32 %v999, %v1001
        %v1003 = vrot.slane %v996, %v1002
        %v1004 = vcombine.low %v840, %v847
        %v1006 = vunpack.c.l.s4 1983009808
        %v1007 = vunpack.c.0.s8 %v1006
        %v1008 = vlaneseq
        %v1009 = vshrl.u32 %v1008, 7
        %v1010 = vsub.s32 %v1007, %v1009
        %v1011 = vrot.slane %v1004, %v1010
        %v1012 = vcombine.low %v850, %v851
        %v1014 = vunpack.c.l.s4 1983009808
        %v1015 = vunpack.c.0.s8 %v1014
        %v1016 = vlaneseq
        %v1017 = vshrl.u32 %v1016, 7
        %v1018 = vsub.s32 %v1015, %v1017
        %v1019 = vrot.slane %v1012, %v1018
        %v1020 = vcombine.low %v995, %v1003
        %v1021 = vcombine.high %v995, %v1003
        %v1023 = vunpack.c.l.s4 1934713408
        %v1024 = vunpack.c.0.s8 %v1023
        %v1025 = vlaneseq
        %v1026 = vshrl.u32 %v1025, 7
        %v1027 = vsub.s32 %v1024, %v1026
        %v1028 = vrot.slane %v1020, %v1027
        %v1030 = vunpack.c.l.s4 1934713408
        %v1031 = vunpack.c.0.s8 %v1030
        %v1032 = vlaneseq
        %v1033 = vshrl.u32 %v1032, 7
        %v1034 = vsub.s32 %v1031, %v1033
        %v1035 = vrot.slane %v1021, %v1034
        %v1036 = vcombine.low %v1011, %v1019
        %v1037 = vcombine.high %v1011, %v1019
        %v1039 = vunpack.c.l.s4 1934713408
        %v1040 = vunpack.c.0.s8 %v1039
        %v1041 = vlaneseq
        %v1042 = vshrl.u32 %v1041, 7
        %v1043 = vsub.s32 %v1040, %v1042
        %v1044 = vrot.slane %v1036, %v1043
        %v1046 = vunpack.c.l.s4 1934713408
        %v1047 = vunpack.c.0.s8 %v1046
        %v1048 = vlaneseq
        %v1049 = vshrl.u32 %v1048, 7
        %v1050 = vsub.s32 %v1047, %v1049
        %v1051 = vrot.slane %v1037, %v1050
        %v1052 = vcombine.low %v1028, %v1044
        %v1053 = vcombine.high %v1028, %v1044
        %v1054 = vcombine.low %v1035, %v1051
        %v1055 = vcombine.high %v1035, %v1051
        %v1056 = vpack.c.bf16 %v980, %v980
        %v1057 = vpack.c.bf16 %v981, %v981
        %v1058 = vpack.c.bf16 %v982, %v982
        %v1059 = vpack.c.bf16 %v983, %v983
        %v1060 = vpack.c.bf16 %v984, %v984
        %v1061 = vpack.c.bf16 %v985, %v985
        %v1062 = vpack.c.bf16 %v986, %v986
        %v1063 = vpack.c.bf16 %v987, %v987
        %v1064 = vpack.c.bf16 %v1052, %v1052
        %v1065 = vpack.c.bf16 %v1053, %v1053
        %v1066 = vpack.c.bf16 %v1054, %v1054
        %v1067 = vpack.c.bf16 %v1055, %v1055
        %vm1068 = vcmask 64512
        %v1070 = vsel %vm1068, %v1056, 0
        %v1073 = vsel %vm1068, %v1060, 0
        %1075 = vmatprep.subr.bf16.mxu0 0
        %1076 = vmatpush1.bf16.xpose.msra.mxu0 0
        %1077 = vmatprep.subr.bf16.mxu0 0
        %1078 = vmatpush1.bf16.xpose.msra.mxu0 0
        %1079 = vmatprep.subr.bf16.mxu0 0
        %1080 = vmatpush1.bf16.xpose.msra.mxu0 0
        %1081 = vmatprep.subr.bf16.mxu0 0
        %1082 = vmatpush1.bf16.xpose.msra.mxu0 0
        %1083 = vmatprep.subr.bf16.mxu0 0
        %1084 = vmatpush1.bf16.xpose.msra.mxu0 0
        %1085 = vmatprep.subr.bf16.mxu0 0
        %1086 = vmatpush1.bf16.xpose.msra.mxu0 0
        %1087 = vmatprep.subr.bf16.mxu0 0
        %1088 = vmatpush1.bf16.xpose.msra.mxu0 0
        %1089 = vmatprep.subr.bf16.mxu0 0
        %1090 = vmatpush1.bf16.xpose.msra.mxu0 %v1073
        %1091 = vmatprep.subr.bf16.mxu0 0
        %1092 = vmatpush2.bf16.xpose.msra.mxu0 0
        %1093 = vmatprep.subr.bf16.mxu0 0
        %1094 = vmatpush2.bf16.xpose.msra.mxu0 0
        %1095 = vmatprep.subr.bf16.mxu0 0
        %1096 = vmatpush2.bf16.xpose.msra.mxu0 0
        %1097 = vmatprep.subr.bf16.mxu0 0
        %1098 = vmatpush2.bf16.xpose.msra.mxu0 0
        %1099 = vmatprep.subr.bf16.mxu0 0
        %1100 = vmatpush2.bf16.xpose.msra.mxu0 0
        %1101 = vmatprep.subr.bf16.mxu0 0
        %1102 = vmatpush2.bf16.xpose.msra.mxu0 0
        %1103 = vmatprep.subr.bf16.mxu0 0
        %1104 = vmatpush2.bf16.xpose.msra.mxu0 0
        %1105 = vmatprep.subr.bf16.mxu0 0
        %1106 = vmatpush2.bf16.xpose.msra.mxu0 0
        %1107 = vmatprep.mubr.bf16.mxu0 0
        %1108 = vmatmul.mubr.bf16.gmra.mxu0 %v1070
        %v1109 = vpop.f32.mrf.mxu0
        %v1110 = vadd.f32 0.0, %v1109
        %v1111 = vpop.f32.mrf.mxu0
        %v1112 = vpop.f32.mrf.mxu0
        %v1113 = vpop.f32.mrf.mxu0
        %1114 = vdwg.mxu0
        %v1116 = vsel %vm1068, %v1057, 0
        %v1119 = vsel %vm1068, %v1061, 0
        %1121 = vmatprep.subr.bf16.mxu0 0
        %1122 = vmatpush1.bf16.xpose.msra.mxu0 0
        %1123 = vmatprep.subr.bf16.mxu0 0
        %1124 = vmatpush1.bf16.xpose.msra.mxu0 0
        %1125 = vmatprep.subr.bf16.mxu0 0
        %1126 = vmatpush1.bf16.xpose.msra.mxu0 0
        %1127 = vmatprep.subr.bf16.mxu0 0
        %1128 = vmatpush1.bf16.xpose.msra.mxu0 0
        %1129 = vmatprep.subr.bf16.mxu0 0
        %1130 = vmatpush1.bf16.xpose.msra.mxu0 0
        %1131 = vmatprep.subr.bf16.mxu0 0
        %1132 = vmatpush1.bf16.xpose.msra.mxu0 0
        %1133 = vmatprep.subr.bf16.mxu0 0
        %1134 = vmatpush1.bf16.xpose.msra.mxu0 0
        %1135 = vmatprep.subr.bf16.mxu0 0
        %1136 = vmatpush1.bf16.xpose.msra.mxu0 %v1119
        %1137 = vmatprep.subr.bf16.mxu0 0
        %1138 = vmatpush2.bf16.xpose.msra.mxu0 0
        %1139 = vmatprep.subr.bf16.mxu0 0
        %1140 = vmatpush2.bf16.xpose.msra.mxu0 0
        %1141 = vmatprep.subr.bf16.mxu0 0
        %1142 = vmatpush2.bf16.xpose.msra.mxu0 0
        %1143 = vmatprep.subr.bf16.mxu0 0
        %1144 = vmatpush2.bf16.xpose.msra.mxu0 0
        %1145 = vmatprep.subr.bf16.mxu0 0
        %1146 = vmatpush2.bf16.xpose.msra.mxu0 0
        %1147 = vmatprep.subr.bf16.mxu0 0
        %1148 = vmatpush2.bf16.xpose.msra.mxu0 0
        %1149 = vmatprep.subr.bf16.mxu0 0
        %1150 = vmatpush2.bf16.xpose.msra.mxu0 0
        %1151 = vmatprep.subr.bf16.mxu0 0
        %1152 = vmatpush2.bf16.xpose.msra.mxu0 0
        %1153 = vmatprep.mubr.bf16.mxu0 0
        %1154 = vmatmul.mubr.bf16.gmra.mxu0 %v1116
        %v1155 = vpop.f32.mrf.mxu0
        %v1156 = vadd.f32 0.0, %v1155
        %v1157 = vpop.f32.mrf.mxu0
        %v1158 = vpop.f32.mrf.mxu0
        %v1159 = vpop.f32.mrf.mxu0
        %1160 = vdwg.mxu0
        %v1162 = vsel %vm1068, %v1058, 0
        %v1165 = vsel %vm1068, %v1062, 0
        %1167 = vmatprep.subr.bf16.mxu0 0
        %1168 = vmatpush1.bf16.xpose.msra.mxu0 0
        %1169 = vmatprep.subr.bf16.mxu0 0
        %1170 = vmatpush1.bf16.xpose.msra.mxu0 0
        %1171 = vmatprep.subr.bf16.mxu0 0
        %1172 = vmatpush1.bf16.xpose.msra.mxu0 0
        %1173 = vmatprep.subr.bf16.mxu0 0
        %1174 = vmatpush1.bf16.xpose.msra.mxu0 0
        %1175 = vmatprep.subr.bf16.mxu0 0
        %1176 = vmatpush1.bf16.xpose.msra.mxu0 0
        %1177 = vmatprep.subr.bf16.mxu0 0
        %1178 = vmatpush1.bf16.xpose.msra.mxu0 0
        %1179 = vmatprep.subr.bf16.mxu0 0
        %1180 = vmatpush1.bf16.xpose.msra.mxu0 0
        %1181 = vmatprep.subr.bf16.mxu0 0
        %1182 = vmatpush1.bf16.xpose.msra.mxu0 %v1165
        %1183 = vmatprep.subr.bf16.mxu0 0
        %1184 = vmatpush2.bf16.xpose.msra.mxu0 0
        %1185 = vmatprep.subr.bf16.mxu0 0
        %1186 = vmatpush2.bf16.xpose.msra.mxu0 0
        %1187 = vmatprep.subr.bf16.mxu0 0
        %1188 = vmatpush2.bf16.xpose.msra.mxu0 0
        %1189 = vmatprep.subr.bf16.mxu0 0
        %1190 = vmatpush2.bf16.xpose.msra.mxu0 0
        %1191 = vmatprep.subr.bf16.mxu0 0
        %1192 = vmatpush2.bf16.xpose.msra.mxu0 0
        %1193 = vmatprep.subr.bf16.mxu0 0
        %1194 = vmatpush2.bf16.xpose.msra.mxu0 0
        %1195 = vmatprep.subr.bf16.mxu0 0
        %1196 = vmatpush2.bf16.xpose.msra.mxu0 0
        %1197 = vmatprep.subr.bf16.mxu0 0
        %1198 = vmatpush2.bf16.xpose.msra.mxu0 0
        %1199 = vmatprep.mubr.bf16.mxu0 0
        %1200 = vmatmul.mubr.bf16.gmra.mxu0 %v1162
        %v1201 = vpop.f32.mrf.mxu0
        %v1202 = vadd.f32 0.0, %v1201
        %v1203 = vpop.f32.mrf.mxu0
        %v1204 = vpop.f32.mrf.mxu0
        %v1205 = vpop.f32.mrf.mxu0
        %1206 = vdwg.mxu0
        %v1208 = vsel %vm1068, %v1059, 0
        %v1211 = vsel %vm1068, %v1063, 0
        %1213 = vmatprep.subr.bf16.mxu0 0
        %1214 = vmatpush1.bf16.xpose.msra.mxu0 0
        %1215 = vmatprep.subr.bf16.mxu0 0
        %1216 = vmatpush1.bf16.xpose.msra.mxu0 0
        %1217 = vmatprep.subr.bf16.mxu0 0
        %1218 = vmatpush1.bf16.xpose.msra.mxu0 0
        %1219 = vmatprep.subr.bf16.mxu0 0
        %1220 = vmatpush1.bf16.xpose.msra.mxu0 0
        %1221 = vmatprep.subr.bf16.mxu0 0
        %1222 = vmatpush1.bf16.xpose.msra.mxu0 0
        %1223 = vmatprep.subr.bf16.mxu0 0
        %1224 = vmatpush1.bf16.xpose.msra.mxu0 0
        %1225 = vmatprep.subr.bf16.mxu0 0
        %1226 = vmatpush1.bf16.xpose.msra.mxu0 0
        %1227 = vmatprep.subr.bf16.mxu0 0
        %1228 = vmatpush1.bf16.xpose.msra.mxu0 %v1211
        %1229 = vmatprep.subr.bf16.mxu0 0
        %1230 = vmatpush2.bf16.xpose.msra.mxu0 0
        %1231 = vmatprep.subr.bf16.mxu0 0
        %1232 = vmatpush2.bf16.xpose.msra.mxu0 0
        %1233 = vmatprep.subr.bf16.mxu0 0
        %1234 = vmatpush2.bf16.xpose.msra.mxu0 0
        %1235 = vmatprep.subr.bf16.mxu0 0
        %1236 = vmatpush2.bf16.xpose.msra.mxu0 0
        %1237 = vmatprep.subr.bf16.mxu0 0
        %1238 = vmatpush2.bf16.xpose.msra.mxu0 0
        %1239 = vmatprep.subr.bf16.mxu0 0
        %1240 = vmatpush2.bf16.xpose.msra.mxu0 0
        %1241 = vmatprep.subr.bf16.mxu0 0
        %1242 = vmatpush2.bf16.xpose.msra.mxu0 0
        %1243 = vmatprep.subr.bf16.mxu0 0
        %1244 = vmatpush2.bf16.xpose.msra.mxu0 0
        %1245 = vmatprep.mubr.bf16.mxu0 0
        %1246 = vmatmul.mubr.bf16.gmra.mxu0 %v1208
        %v1247 = vpop.f32.mrf.mxu0
        %v1248 = vadd.f32 0.0, %v1247
        %v1249 = vpop.f32.mrf.mxu0
        %v1250 = vpop.f32.mrf.mxu0
        %v1251 = vpop.f32.mrf.mxu0
        %1252 = vdwg.mxu0
        %v1253 = vmul.f32 %v1110, 0.35355338
        %v1254 = vmul.f32 %v1156, 0.35355338
        %v1255 = vmul.f32 %v1202, 0.35355338
        %v1256 = vmul.f32 %v1248, 0.35355338
        %v1257 = vsel %vm1068, %v1253, -inf
        %1258 = vmax.xlane.f32.xlu0 %v1257
        %v1259 = vpop.xlane.xlu0 %1258
        %v1260 = vsel %vm1068, %v1254, -inf
        %1261 = vmax.xlane.f32.xlu0 %v1260
        %v1262 = vpop.xlane.xlu0 %1261
        %v1263 = vsel %vm1068, %v1255, -inf
        %1264 = vmax.xlane.f32.xlu0 %v1263
        %v1265 = vpop.xlane.xlu0 %1264
        %v1266 = vsel %vm1068, %v1256, -inf
        %1267 = vmax.xlane.f32.xlu0 %v1266
        %v1268 = vpop.xlane.xlu0 %1267
        %v1269 = vsub.f32 %v1253, %v1259
        %v1270 = vsub.f32 %v1254, %v1262
        %v1271 = vsub.f32 %v1255, %v1265
        %v1272 = vsub.f32 %v1256, %v1268
        %v1273 = vmul.f32 %v1269, 1.442695
        %v1274 = vpow.pop %v1273
        %v1275 = vmul.f32 %v1270, 1.442695
        %v1276 = vpow.pop %v1275
        %v1277 = vmul.f32 %v1271, 1.442695
        %v1278 = vpow.pop %v1277
        %v1279 = vmul.f32 %v1272, 1.442695
        %v1280 = vpow.pop %v1279
        %v1281 = vsel %vm1068, %v1274, 0.0
        %1282 = vadd.xlane.f32.xlu0 %v1281
        %v1283 = vpop.xlane.xlu0 %1282
        %v1284 = vsel %vm1068, %v1276, 0.0
        %1285 = vadd.xlane.f32.xlu0 %v1284
        %v1286 = vpop.xlane.xlu0 %1285
        %v1287 = vsel %vm1068, %v1278, 0.0
        %1288 = vadd.xlane.f32.xlu0 %v1287
        %v1289 = vpop.xlane.xlu0 %1288
        %v1290 = vsel %vm1068, %v1280, 0.0
        %1291 = vadd.xlane.f32.xlu0 %v1290
        %v1292 = vpop.xlane.xlu0 %1291
        %v1293 = vrcp.pop %v1283
        %v1294 = vrcp.pop %v1286
        %v1295 = vrcp.pop %v1289
        %v1296 = vrcp.pop %v1292
        %v1297 = vmul.f32 %v1274, %v1293
        %v1298 = vmul.f32 %v1276, %v1294
        %v1299 = vmul.f32 %v1278, %v1295
        %v1300 = vmul.f32 %v1280, %v1296
        %v1301 = vpack.c.bf16 %v1297, %v1297
        %v1302 = vpack.c.bf16 %v1298, %v1298
        %v1303 = vpack.c.bf16 %v1299, %v1299
        %v1304 = vpack.c.bf16 %v1300, %v1300
        %v1306 = vsel %vm1068, %v1301, 0
        %vm1308 = vcmask 1043456
        %v1310 = vsel %vm1308, %v1064, 0
        %1312 = vmatprep.subr.bf16.mxu0 0
        %1313 = vmatpush1.bf16.msra.mxu0 0
        %1314 = vmatprep.subr.bf16.mxu0 0
        %1315 = vmatpush1.bf16.msra.mxu0 0
        %1316 = vmatprep.subr.bf16.mxu0 0
        %1317 = vmatpush1.bf16.msra.mxu0 0
        %1318 = vmatprep.subr.bf16.mxu0 0
        %1319 = vmatpush1.bf16.msra.mxu0 0
        %1320 = vmatprep.subr.bf16.mxu0 0
        %1321 = vmatpush1.bf16.msra.mxu0 0
        %1322 = vmatprep.subr.bf16.mxu0 0
        %1323 = vmatpush1.bf16.msra.mxu0 0
        %1324 = vmatprep.subr.bf16.mxu0 0
        %1325 = vmatpush1.bf16.msra.mxu0 0
        %1326 = vmatprep.subr.bf16.mxu0 0
        %1327 = vmatpush1.bf16.msra.mxu0 %v1310
        %1328 = vmatprep.subr.bf16.mxu0 0
        %1329 = vmatpush2.bf16.msra.mxu0 0
        %1330 = vmatprep.subr.bf16.mxu0 0
        %1331 = vmatpush2.bf16.msra.mxu0 0
        %1332 = vmatprep.subr.bf16.mxu0 0
        %1333 = vmatpush2.bf16.msra.mxu0 0
        %1334 = vmatprep.subr.bf16.mxu0 0
        %1335 = vmatpush2.bf16.msra.mxu0 0
        %1336 = vmatprep.subr.bf16.mxu0 0
        %1337 = vmatpush2.bf16.msra.mxu0 0
        %1338 = vmatprep.subr.bf16.mxu0 0
        %1339 = vmatpush2.bf16.msra.mxu0 0
        %1340 = vmatprep.subr.bf16.mxu0 0
        %1341 = vmatpush2.bf16.msra.mxu0 0
        %1342 = vmatprep.subr.bf16.mxu0 0
        %1343 = vmatpush2.bf16.msra.mxu0 0
        %1344 = vmatprep.mubr.bf16.mxu0 0
        %1345 = vmatmul.mubr.bf16.gmra.mxu0 %v1306
        %v1346 = vpop.f32.mrf.mxu0
        %v1347 = vadd.f32 0.0, %v1346
        %v1348 = vpop.f32.mrf.mxu0
        %v1349 = vpop.f32.mrf.mxu0
        %v1350 = vpop.f32.mrf.mxu0
        %1351 = vdwg.mxu0
        %v1353 = vsel %vm1068, %v1302, 0
        %v1356 = vsel %vm1308, %v1065, 0
        %1358 = vmatprep.subr.bf16.mxu0 0
        %1359 = vmatpush1.bf16.msra.mxu0 0
        %1360 = vmatprep.subr.bf16.mxu0 0
        %1361 = vmatpush1.bf16.msra.mxu0 0
        %1362 = vmatprep.subr.bf16.mxu0 0
        %1363 = vmatpush1.bf16.msra.mxu0 0
        %1364 = vmatprep.subr.bf16.mxu0 0
        %1365 = vmatpush1.bf16.msra.mxu0 0
        %1366 = vmatprep.subr.bf16.mxu0 0
        %1367 = vmatpush1.bf16.msra.mxu0 0
        %1368 = vmatprep.subr.bf16.mxu0 0
        %1369 = vmatpush1.bf16.msra.mxu0 0
        %1370 = vmatprep.subr.bf16.mxu0 0
        %1371 = vmatpush1.bf16.msra.mxu0 0
        %1372 = vmatprep.subr.bf16.mxu0 0
        %1373 = vmatpush1.bf16.msra.mxu0 %v1356
        %1374 = vmatprep.subr.bf16.mxu0 0
        %1375 = vmatpush2.bf16.msra.mxu0 0
        %1376 = vmatprep.subr.bf16.mxu0 0
        %1377 = vmatpush2.bf16.msra.mxu0 0
        %1378 = vmatprep.subr.bf16.mxu0 0
        %1379 = vmatpush2.bf16.msra.mxu0 0
        %1380 = vmatprep.subr.bf16.mxu0 0
        %1381 = vmatpush2.bf16.msra.mxu0 0
        %1382 = vmatprep.subr.bf16.mxu0 0
        %1383 = vmatpush2.bf16.msra.mxu0 0
        %1384 = vmatprep.subr.bf16.mxu0 0
        %1385 = vmatpush2.bf16.msra.mxu0 0
        %1386 = vmatprep.subr.bf16.mxu0 0
        %1387 = vmatpush2.bf16.msra.mxu0 0
        %1388 = vmatprep.subr.bf16.mxu0 0
        %1389 = vmatpush2.bf16.msra.mxu0 0
        %1390 = vmatprep.mubr.bf16.mxu0 0
        %1391 = vmatmul.mubr.bf16.gmra.mxu0 %v1353
        %v1392 = vpop.f32.mrf.mxu0
        %v1393 = vadd.f32 0.0, %v1392
        %v1394 = vpop.f32.mrf.mxu0
        %v1395 = vpop.f32.mrf.mxu0
        %v1396 = vpop.f32.mrf.mxu0
        %1397 = vdwg.mxu0
        %v1399 = vsel %vm1068, %v1303, 0
        %v1402 = vsel %vm1308, %v1066, 0
        %1404 = vmatprep.subr.bf16.mxu0 0
        %1405 = vmatpush1.bf16.msra.mxu0 0
        %1406 = vmatprep.subr.bf16.mxu0 0
        %1407 = vmatpush1.bf16.msra.mxu0 0
        %1408 = vmatprep.subr.bf16.mxu0 0
        %1409 = vmatpush1.bf16.msra.mxu0 0
        %1410 = vmatprep.subr.bf16.mxu0 0
        %1411 = vmatpush1.bf16.msra.mxu0 0
        %1412 = vmatprep.subr.bf16.mxu0 0
        %1413 = vmatpush1.bf16.msra.mxu0 0
        %1414 = vmatprep.subr.bf16.mxu0 0
        %1415 = vmatpush1.bf16.msra.mxu0 0
        %1416 = vmatprep.subr.bf16.mxu0 0
        %1417 = vmatpush1.bf16.msra.mxu0 0
        %1418 = vmatprep.subr.bf16.mxu0 0
        %1419 = vmatpush1.bf16.msra.mxu0 %v1402
        %1420 = vmatprep.subr.bf16.mxu0 0
        %1421 = vmatpush2.bf16.msra.mxu0 0
        %1422 = vmatprep.subr.bf16.mxu0 0
        %1423 = vmatpush2.bf16.msra.mxu0 0
        %1424 = vmatprep.subr.bf16.mxu0 0
        %1425 = vmatpush2.bf16.msra.mxu0 0
        %1426 = vmatprep.subr.bf16.mxu0 0
        %1427 = vmatpush2.bf16.msra.mxu0 0
        %1428 = vmatprep.subr.bf16.mxu0 0
        %1429 = vmatpush2.bf16.msra.mxu0 0
        %1430 = vmatprep.subr.bf16.mxu0 0
        %1431 = vmatpush2.bf16.msra.mxu0 0
        %1432 = vmatprep.subr.bf16.mxu0 0
        %1433 = vmatpush2.bf16.msra.mxu0 0
        %1434 = vmatprep.subr.bf16.mxu0 0
        %1435 = vmatpush2.bf16.msra.mxu0 0
        %1436 = vmatprep.mubr.bf16.mxu0 0
        %1437 = vmatmul.mubr.bf16.gmra.mxu0 %v1399
        %v1438 = vpop.f32.mrf.mxu0
        %v1439 = vadd.f32 0.0, %v1438
        %v1440 = vpop.f32.mrf.mxu0
        %v1441 = vpop.f32.mrf.mxu0
        %v1442 = vpop.f32.mrf.mxu0
        %1443 = vdwg.mxu0
        %v1445 = vsel %vm1068, %v1304, 0
        %v1448 = vsel %vm1308, %v1067, 0
        %1450 = vmatprep.subr.bf16.mxu0 0
        %1451 = vmatpush1.bf16.msra.mxu0 0
        %1452 = vmatprep.subr.bf16.mxu0 0
        %1453 = vmatpush1.bf16.msra.mxu0 0
        %1454 = vmatprep.subr.bf16.mxu0 0
        %1455 = vmatpush1.bf16.msra.mxu0 0
        %1456 = vmatprep.subr.bf16.mxu0 0
        %1457 = vmatpush1.bf16.msra.mxu0 0
        %1458 = vmatprep.subr.bf16.mxu0 0
        %1459 = vmatpush1.bf16.msra.mxu0 0
        %1460 = vmatprep.subr.bf16.mxu0 0
        %1461 = vmatpush1.bf16.msra.mxu0 0
        %1462 = vmatprep.subr.bf16.mxu0 0
        %1463 = vmatpush1.bf16.msra.mxu0 0
        %1464 = vmatprep.subr.bf16.mxu0 0
        %1465 = vmatpush1.bf16.msra.mxu0 %v1448
        %1466 = vmatprep.subr.bf16.mxu0 0
        %1467 = vmatpush2.bf16.msra.mxu0 0
        %1468 = vmatprep.subr.bf16.mxu0 0
        %1469 = vmatpush2.bf16.msra.mxu0 0
        %1470 = vmatprep.subr.bf16.mxu0 0
        %1471 = vmatpush2.bf16.msra.mxu0 0
        %1472 = vmatprep.subr.bf16.mxu0 0
        %1473 = vmatpush2.bf16.msra.mxu0 0
        %1474 = vmatprep.subr.bf16.mxu0 0
        %1475 = vmatpush2.bf16.msra.mxu0 0
        %1476 = vmatprep.subr.bf16.mxu0 0
        %1477 = vmatpush2.bf16.msra.mxu0 0
        %1478 = vmatprep.subr.bf16.mxu0 0
        %1479 = vmatpush2.bf16.msra.mxu0 0
        %1480 = vmatprep.subr.bf16.mxu0 0
        %1481 = vmatpush2.bf16.msra.mxu0 0
        %1482 = vmatprep.mubr.bf16.mxu0 0
        %1483 = vmatmul.mubr.bf16.gmra.mxu0 %v1445
        %v1484 = vpop.f32.mrf.mxu0
        %v1485 = vadd.f32 0.0, %v1484
        %v1486 = vpop.f32.mrf.mxu0
        %v1487 = vpop.f32.mrf.mxu0
        %v1488 = vpop.f32.mrf.mxu0
        %1489 = vdwg.mxu0
        %v1490 = vcombine.low %v1347, %v1439
        %v1491 = vcombine.high %v1347, %v1439
        %v1493 = vunpack.c.l.s4 1983009808
        %v1494 = vunpack.c.0.s8 %v1493
        %v1495 = vlaneseq
        %v1496 = vshrl.u32 %v1495, 7
        %v1497 = vsub.s32 %v1494, %v1496
        %v1498 = vrot.slane %v1490, %v1497
        %v1500 = vunpack.c.l.s4 1983009808
        %v1501 = vunpack.c.0.s8 %v1500
        %v1502 = vlaneseq
        %v1503 = vshrl.u32 %v1502, 7
        %v1504 = vsub.s32 %v1501, %v1503
        %v1505 = vrot.slane %v1491, %v1504
        %v1506 = vcombine.low %v1393, %v1485
        %v1507 = vcombine.high %v1393, %v1485
        %v1509 = vunpack.c.l.s4 1983009808
        %v1510 = vunpack.c.0.s8 %v1509
        %v1511 = vlaneseq
        %v1512 = vshrl.u32 %v1511, 7
        %v1513 = vsub.s32 %v1510, %v1512
        %v1514 = vrot.slane %v1506, %v1513
        %v1516 = vunpack.c.l.s4 1983009808
        %v1517 = vunpack.c.0.s8 %v1516
        %v1518 = vlaneseq
        %v1519 = vshrl.u32 %v1518, 7
        %v1520 = vsub.s32 %v1517, %v1519
        %v1521 = vrot.slane %v1507, %v1520
        %v1522 = vcombine.low %v1498, %v1514
        %v1523 = vcombine.high %v1498, %v1514
        %v1525 = vunpack.c.l.s4 1934713408
        %v1526 = vunpack.c.0.s8 %v1525
        %v1527 = vlaneseq
        %v1528 = vshrl.u32 %v1527, 7
        %v1529 = vsub.s32 %v1526, %v1528
        %v1530 = vrot.slane %v1522, %v1529
        %v1532 = vunpack.c.l.s4 1934713408
        %v1533 = vunpack.c.0.s8 %v1532
        %v1534 = vlaneseq
        %v1535 = vshrl.u32 %v1534, 7
        %v1536 = vsub.s32 %v1533, %v1535
        %v1537 = vrot.slane %v1523, %v1536
        %v1538 = vcombine.low %v1505, %v1521
        %v1539 = vcombine.high %v1505, %v1521
        %v1541 = vunpack.c.l.s4 1934713408
        %v1542 = vunpack.c.0.s8 %v1541
        %v1543 = vlaneseq
        %v1544 = vshrl.u32 %v1543, 7
        %v1545 = vsub.s32 %v1542, %v1544
        %v1546 = vrot.slane %v1538, %v1545
        %v1548 = vunpack.c.l.s4 1934713408
        %v1549 = vunpack.c.0.s8 %v1548
        %v1550 = vlaneseq
        %v1551 = vshrl.u32 %v1550, 7
        %v1552 = vsub.s32 %v1549, %v1551
        %v1553 = vrot.slane %v1539, %v1552
        %v1554 = vcombine.high %v1530, 0.0
        %v1555 = vcombine.high %v1537, 0.0
        %v1556 = vcombine.high %v1546, 0.0
        %v1557 = vcombine.high %v1553, 0.0
        %v1558 = vcombine.low %v1530, %v1537
        %v1560 = vunpack.c.l.s4 1983009808
        %v1561 = vunpack.c.0.s8 %v1560
        %v1562 = vlaneseq
        %v1563 = vshrl.u32 %v1562, 7
        %v1564 = vsub.s32 %v1561, %v1563
        %v1565 = vrot.slane %v1558, %v1564
        %v1566 = vcombine.low %v1554, %v1555
        %v1568 = vunpack.c.l.s4 1983009808
        %v1569 = vunpack.c.0.s8 %v1568
        %v1570 = vlaneseq
        %v1571 = vshrl.u32 %v1570, 7
        %v1572 = vsub.s32 %v1569, %v1571
        %v1573 = vrot.slane %v1566, %v1572
        %v1574 = vcombine.low %v1546, %v1553
        %v1576 = vunpack.c.l.s4 1983009808
        %v1577 = vunpack.c.0.s8 %v1576
        %v1578 = vlaneseq
        %v1579 = vshrl.u32 %v1578, 7
        %v1580 = vsub.s32 %v1577, %v1579
        %v1581 = vrot.slane %v1574, %v1580
        %v1582 = vcombine.low %v1556, %v1557
        %v1584 = vunpack.c.l.s4 1983009808
        %v1585 = vunpack.c.0.s8 %v1584
        %v1586 = vlaneseq
        %v1587 = vshrl.u32 %v1586, 7
        %v1588 = vsub.s32 %v1585, %v1587
        %v1589 = vrot.slane %v1582, %v1588
        %v1590 = vcombine.low %v1565, %v1573
        %v1591 = vcombine.high %v1565, %v1573
        %v1593 = vunpack.c.l.s4 1934713408
        %v1594 = vunpack.c.0.s8 %v1593
        %v1595 = vlaneseq
        %v1596 = vshrl.u32 %v1595, 7
        %v1597 = vsub.s32 %v1594, %v1596
        %v1598 = vrot.slane %v1590, %v1597
        %v1600 = vunpack.c.l.s4 1934713408
        %v1601 = vunpack.c.0.s8 %v1600
        %v1602 = vlaneseq
        %v1603 = vshrl.u32 %v1602, 7
        %v1604 = vsub.s32 %v1601, %v1603
        %v1605 = vrot.slane %v1591, %v1604
        %v1606 = vcombine.low %v1581, %v1589
        %v1607 = vcombine.high %v1581, %v1589
        %v1609 = vunpack.c.l.s4 1934713408
        %v1610 = vunpack.c.0.s8 %v1609
        %v1611 = vlaneseq
        %v1612 = vshrl.u32 %v1611, 7
        %v1613 = vsub.s32 %v1610, %v1612
        %v1614 = vrot.slane %v1606, %v1613
        %v1616 = vunpack.c.l.s4 1934713408
        %v1617 = vunpack.c.0.s8 %v1616
        %v1618 = vlaneseq
        %v1619 = vshrl.u32 %v1618, 7
        %v1620 = vsub.s32 %v1617, %v1619
        %v1621 = vrot.slane %v1607, %v1620
        %v1622 = vcombine.low %v1598, %v1614
        %v1623 = vcombine.high %v1598, %v1614
        %v1624 = vcombine.low %v1605, %v1621
        %v1625 = vcombine.high %v1605, %v1621
        %1627 = vrot.lane.b32.xlu0 %v1623, 8
        %v1628 = vpop.permute.xlu0 %1627
        %1631 = vrot.lane.b32.xlu0 %v1624, 16
        %v1632 = vpop.permute.xlu0 %1631
        %1635 = vrot.lane.b32.xlu0 %v1625, 24
        %v1636 = vpop.permute.xlu0 %1635
        %v1638 = vsel %vm1068, %v1622, %v1628
        %vm1639 = vcmask 130048
        %v1640 = vsel %vm1639, %v1638, %v1632
        %vm1641 = vcmask 195584
        %v1642 = vsel %vm1641, %v1640, %v1636
        %v1643 = vpack.c.bf16 %v1642, %v1642
        %v1644 = vld [vmem:[%s3] sm:$0xf]
        %v1645 = vld [vmem:[%s3 + $0x4] sm:$0xf]
        %v1646 = vld [vmem:[%s3 + $0x8] sm:$0xf]
        %v1647 = vld [vmem:[%s3 + $0xc] sm:$0xf]
        %v1648 = vld [vmem:[%s4] sm:$0x1]
        %v1650 = vlaneseq
        %v1651 = vshrl.u32 %v1650, 7
        %v1652 = vsub.s32 0, %v1651
        %v1653 = vrot.slane %v1648, %v1652
        %v1659 = vunpack.c.l.b16 %v1644
        %v1660 = vunpack.c.l.b16 %v1645
        %v1661 = vunpack.c.l.b16 %v1646
        %v1662 = vunpack.c.l.b16 %v1647
        %v1663 = vpack.c.b16 %v1660, %v1659
        %v1664 = vpack.c.b16 %v1662, %v1661
        %v1668 = vsel %vm570, %v1643, 0
        %1670 = vmatprep.subr.bf16.mxu0 0
        %1671 = vmatpush1.bf16.msra.mxu0 0
        %1672 = vmatprep.subr.bf16.mxu0 0
        %1673 = vmatpush1.bf16.msra.mxu0 0
        %1674 = vmatprep.subr.bf16.mxu0 0
        %1675 = vmatpush1.bf16.msra.mxu0 0
        %1676 = vmatprep.subr.bf16.mxu0 0
        %1677 = vmatpush1.bf16.msra.mxu0 0
        %1678 = vmatprep.subr.bf16.mxu0 0
        %1679 = vmatpush1.bf16.msra.mxu0 0
        %1680 = vmatprep.subr.bf16.mxu0 0
        %1681 = vmatpush1.bf16.msra.mxu0 0
        %1682 = vmatprep.subr.bf16.mxu0 0
        %1683 = vmatpush1.bf16.msra.mxu0 %v1664
        %1684 = vmatprep.subr.bf16.mxu0 0
        %1685 = vmatpush1.bf16.msra.mxu0 %v1663
        %1686 = vmatprep.subr.bf16.mxu0 0
        %1687 = vmatpush2.bf16.msra.mxu0 0
        %1688 = vmatprep.subr.bf16.mxu0 0
        %1689 = vmatpush2.bf16.msra.mxu0 0
        %1690 = vmatprep.subr.bf16.mxu0 0
        %1691 = vmatpush2.bf16.msra.mxu0 0
        %1692 = vmatprep.subr.bf16.mxu0 0
        %1693 = vmatpush2.bf16.msra.mxu0 0
        %1694 = vmatprep.subr.bf16.mxu0 0
        %1695 = vmatpush2.bf16.msra.mxu0 0
        %1696 = vmatprep.subr.bf16.mxu0 0
        %1697 = vmatpush2.bf16.msra.mxu0 0
        %1698 = vmatprep.subr.bf16.mxu0 0
        %1699 = vmatpush2.bf16.msra.mxu0 0
        %1700 = vmatprep.subr.bf16.mxu0 0
        %1701 = vmatpush2.bf16.msra.mxu0 0
        %1702 = vmatprep.mubr.bf16.mxu0 0
        %1703 = vmatmul.mubr.bf16.gmra.mxu0 %v1668
        %v1704 = vpop.f32.mrf.mxu0
        %v1705 = vadd.f32 %v1653, %v1704
        %v1706 = vpop.f32.mrf.mxu0
        %v1707 = vpop.f32.mrf.mxu0
        %v1708 = vpop.f32.mrf.mxu0
        %1709 = vdwg.mxu0
        %v1710 = vld [vmem:[%s5] sm:$0x1]
        %v1711 = vld [vmem:[%s6] sm:$0x1]
        %v1712 = vsel %vm570, %v1705, 0.0
        %1713 = vadd.xlane.f32.xlu0 %v1712
        %v1714 = vpop.xlane.xlu0 %1713
        %v1715 = vrcp.pop 32.0
        %v1716 = vmul.f32 %v1714, %v1715
        %v1717 = vsub.f32 %v1705, %v1716
        %v1718 = vmul.f32 %v1717, %v1717
        %v1719 = vsel %vm570, %v1718, 0.0
        %1720 = vadd.xlane.f32.xlu0 %v1719
        %v1721 = vpop.xlane.xlu0 %1720
        %v1722 = vmul.f32 %v1721, %v1715
        %v1723 = vadd.f32 %v1722, 1e-12
        %v1724 = vrsqrt.pop %v1723
        %v1725 = vmul.f32 %v1717, %v1724
        %v1727 = vlaneseq
        %v1728 = vshrl.u32 %v1727, 7
        %v1729 = vsub.s32 0, %v1728
        %v1730 = vrot.slane %v1710, %v1729
        %v1732 = vmul.f32 %v1725, %v1730
        %v1734 = vlaneseq
        %v1735 = vshrl.u32 %v1734, 7
        %v1736 = vsub.s32 0, %v1735
        %v1737 = vrot.slane %v1711, %v1736
        %v1739 = vadd.f32 %v1732, %v1737
        %v1740 = vadd.f32 %v545, %v1739
        %v1741 = vld [vmem:[%s7] sm:$0xff]
        %v1742 = vld [vmem:[%s7 + $0x8] sm:$0xff]
        %v1743 = vld [vmem:[%s7 + $0x10] sm:$0xff]
        %v1744 = vld [vmem:[%s7 + $0x18] sm:$0xff]
        %v1745 = vld [vmem:[%s8] sm:$0x1]
        %v1747 = vlaneseq
        %v1748 = vshrl.u32 %v1747, 7
        %v1749 = vsub.s32 0, %v1748
        %v1750 = vrot.slane %v1745, %v1749
        %v1753 = vsel %vm570, %v1740, 0
        %1755 = vmatprep.subr.mxu0 0.0
        %1756 = vmatpush1.msra.mxu0 0.0
        %1757 = vmatprep.subr.mxu0 0.0
        %1758 = vmatpush1.msra.mxu0 0.0
        %1759 = vmatprep.subr.mxu0 0.0
        %1760 = vmatpush1.msra.mxu0 0.0
        %1761 = vmatprep.subr.mxu0 0.0
        %1762 = vmatpush1.msra.mxu0 0.0
        %1763 = vmatprep.subr.mxu0 0.0
        %1764 = vmatpush1.msra.mxu0 0.0
        %1765 = vmatprep.subr.mxu0 0.0
        %1766 = vmatpush1.msra.mxu0 0.0
        %1767 = vmatprep.subr.mxu0 0.0
        %1768 = vmatpush1.msra.mxu0 0.0
        %1769 = vmatprep.subr.mxu0 0.0
        %1770 = vmatpush1.msra.mxu0 0.0
        %1771 = vmatprep.subr.mxu0 0.0
        %1772 = vmatpush1.msra.mxu0 0.0
        %1773 = vmatprep.subr.mxu0 0.0
        %1774 = vmatpush1.msra.mxu0 0.0
        %1775 = vmatprep.subr.mxu0 0.0
        %1776 = vmatpush1.msra.mxu0 0.0
        %1777 = vmatprep.subr.mxu0 0.0
        %1778 = vmatpush1.msra.mxu0 0.0
        %1779 = vmatprep.subr.mxu0 0.0
        %1780 = vmatpush1.msra.mxu0 %v1744
        %1781 = vmatprep.subr.mxu0 0.0
        %1782 = vmatpush1.msra.mxu0 %v1743
        %1783 = vmatprep.subr.mxu0 0.0
        %1784 = vmatpush1.msra.mxu0 %v1742
        %1785 = vmatprep.subr.mxu0 0.0
        %1786 = vmatpush1.msra.mxu0 %v1741
        %1787 = vmatprep.subr.mxu0 0.0
        %1788 = vmatpush2.msra.mxu0 0.0
        %1789 = vmatprep.subr.mxu0 0.0
        %1790 = vmatpush2.msra.mxu0 0.0
        %1791 = vmatprep.subr.mxu0 0.0
        %1792 = vmatpush2.msra.mxu0 0.0
        %1793 = vmatprep.subr.mxu0 0.0
        %1794 = vmatpush2.msra.mxu0 0.0
        %1795 = vmatprep.subr.mxu0 0.0
        %1796 = vmatpush2.msra.mxu0 0.0
        %1797 = vmatprep.subr.mxu0 0.0
        %1798 = vmatpush2.msra.mxu0 0.0
        %1799 = vmatprep.subr.mxu0 0.0
        %1800 = vmatpush2.msra.mxu0 0.0
        %1801 = vmatprep.subr.mxu0 0.0
        %1802 = vmatpush2.msra.mxu0 0.0
        %1803 = vmatprep.subr.mxu0 0.0
        %1804 = vmatpush2.msra.mxu0 0.0
        %1805 = vmatprep.subr.mxu0 0.0
        %1806 = vmatpush2.msra.mxu0 0.0
        %1807 = vmatprep.subr.mxu0 0.0
        %1808 = vmatpush2.msra.mxu0 0.0
        %1809 = vmatprep.subr.mxu0 0.0
        %1810 = vmatpush2.msra.mxu0 0.0
        %1811 = vmatprep.subr.mxu0 0.0
        %1812 = vmatpush2.msra.mxu0 0.0
        %1813 = vmatprep.subr.mxu0 0.0
        %1814 = vmatpush2.msra.mxu0 0.0
        %1815 = vmatprep.subr.mxu0 0.0
        %1816 = vmatpush2.msra.mxu0 0.0
        %1817 = vmatprep.subr.mxu0 0.0
        %1818 = vmatpush2.msra.mxu0 0.0
        %1819 = vmatprep.mubr.f32.mxu0 0.0
        %1820 = vmatmul.mubr.f32.gmra.mxu0 %v1753
        %v1821 = vpop.f32.mrf.mxu0
        %v1822 = vadd.f32 %v1750, %v1821
        %v1823 = vpop.f32.mrf.mxu0
        %1824 = vdwg.mxu0
        %vm1825 = vcmask 48128
        %v1826 = vsel %vm1825, %v1822, -inf
        %1827 = vmax.xlane.f32.xlu0 %v1826
        %v1828 = vpop.xlane.xlu0 %1827
        %v1829 = vsub.f32 %v1822, %v1828
        %v1830 = vmul.f32 %v1829, 1.442695
        %v1831 = vpow.pop %v1830
        %v1832 = vsel %vm1825, %v1831, 0.0
        %1833 = vadd.xlane.f32.xlu0 %v1832
        %v1834 = vpop.xlane.xlu0 %1833
        %v1835 = vrcp.pop %v1834
        %v1836 = vmul.f32 %v1831, %v1835
        %v1837 = vsel %vm1825, %v1836, -inf
        %1838 = vmax.xlane.f32.xlu0 %v1837
        %v1839 = vpop.xlane.xlu0 %1838
        %vm1840 = vcmp.ge.f32.partialorder %v1836, %v1839
        %v1841 = vsel %vm1840, 0.0, %v1836
        %v1842 = vsel %vm1825, %v1841, -inf
        %1843 = vmax.xlane.f32.xlu0 %v1842
        %v1844 = vpop.xlane.xlu0 %1843
        %vm1845 = vcmp.ge.f32.partialorder %v1836, %v1844
        %v1846 = vsel %vm1845, 1, 0
        %v1847 = vcvt.s32.f32 %v1846
        %v1848 = vmul.f32 %v1836, %v1847
        %v1849 = vsel %vm1825, %v1848, 0.0
        %1850 = vadd.xlane.f32.xlu0 %v1849
        %v1851 = vpop.xlane.xlu0 %1850
        %v1852 = vrcp.pop %v1851
        %v1853 = vmul.f32 %v1848, %v1852
        %v1854 = vpack.c.bf16 %v1740, %v1740
        %v1855 = vld [vmem:[%s9] sm:$0xff]
        %v1856 = vld [vmem:[%s9 + $0x8] sm:$0xf]
        %v1857 = vld [vmem:[%s9 + $0xc] sm:$0xff]
        %v1858 = vld [vmem:[%s9 + $0x14] sm:$0xf]
        %v1859 = vld [vmem:[%s9 + $0x18] sm:$0xff]
        %v1860 = vld [vmem:[%s9 + $0x20] sm:$0xf]
        %v1861 = vld [vmem:[%s9 + $0x24] sm:$0xff]
        %v1862 = vld [vmem:[%s9 + $0x2c] sm:$0xf]
        %v1863 = vld [vmem:[%s10] sm:$0x7]
        %v1865 = vlaneseq
        %v1866 = vshrl.u32 %v1865, 7
        %v1867 = vsub.s32 0, %v1866
        %v1868 = vrot.slane %v1863, %v1867
        %v1869 = vlaneseq
        %v1870 = vshrl.u32 %v1869, 7
        %v1871 = vsub.s32 1, %v1870
        %v1872 = vrot.slane %v1863, %v1871
        %v1873 = vlaneseq
        %v1874 = vshrl.u32 %v1873, 7
        %v1875 = vsub.s32 2, %v1874
        %v1876 = vrot.slane %v1863, %v1875
        %v1888 = vunpack.c.l.b16 %v1855
        %v1889 = vunpack.c.h.b16 %v1855
        %v1890 = vunpack.c.l.b16 %v1856
        %v1891 = vunpack.c.l.b16 %v1857
        %v1892 = vunpack.c.h.b16 %v1857
        %v1893 = vunpack.c.l.b16 %v1858
        %v1894 = vunpack.c.l.b16 %v1859
        %v1895 = vunpack.c.h.b16 %v1859
        %v1896 = vunpack.c.l.b16 %v1860
        %v1897 = vunpack.c.l.b16 %v1861
        %v1898 = vunpack.c.h.b16 %v1861
        %v1899 = vunpack.c.l.b16 %v1862
        %v1900 = vpack.c.b16 %v1891, %v1888
        %v1901 = vpack.c.b16 %v1892, %v1889
        %v1902 = vpack.c.b16 %v1893, %v1890
        %v1903 = vpack.c.b16 %v1897, %v1894
        %v1904 = vpack.c.b16 %v1898, %v1895
        %v1905 = vpack.c.b16 %v1899, %v1896
        %v1913 = vsel %vm570, %v1854, 0
        %1915 = vmatprep.subr.bf16.mxu0 0
        %1916 = vmatpush1.bf16.msra.mxu0 0
        %1917 = vmatprep.subr.bf16.mxu0 0
        %1918 = vmatpush1.bf16.msra.mxu0 0
        %1919 = vmatprep.subr.bf16.mxu0 0
        %1920 = vmatpush1.bf16.msra.mxu0 0
        %1921 = vmatprep.subr.bf16.mxu0 0
        %1922 = vmatpush1.bf16.msra.mxu0 0
        %1923 = vmatprep.subr.bf16.mxu0 0
        %1924 = vmatpush1.bf16.msra.mxu0 0
        %1925 = vmatprep.subr.bf16.mxu0 0
        %1926 = vmatpush1.bf16.msra.mxu0 0
        %1927 = vmatprep.subr.bf16.mxu0 %v1904
        %1928 = vmatpush1.bf16.msra.mxu0 %v1903
        %1929 = vmatprep.subr.bf16.mxu0 %v1901
        %1930 = vmatpush1.bf16.msra.mxu0 %v1900
        %1931 = vmatprep.subr.bf16.mxu0 0
        %1932 = vmatpush2.bf16.msra.mxu0 0
        %1933 = vmatprep.subr.bf16.mxu0 0
        %1934 = vmatpush2.bf16.msra.mxu0 0
        %1935 = vmatprep.subr.bf16.mxu0 0
        %1936 = vmatpush2.bf16.msra.mxu0 0
        %1937 = vmatprep.subr.bf16.mxu0 0
        %1938 = vmatpush2.bf16.msra.mxu0 0
        %1939 = vmatprep.subr.bf16.mxu0 0
        %1940 = vmatpush2.bf16.msra.mxu0 0
        %1941 = vmatprep.subr.bf16.mxu0 0
        %1942 = vmatpush2.bf16.msra.mxu0 0
        %1943 = vmatprep.subr.bf16.mxu0 0
        %1944 = vmatpush2.bf16.msra.mxu0 0
        %1945 = vmatprep.subr.bf16.mxu0 0
        %1946 = vmatpush2.bf16.msra.mxu0 0
        %1947 = vmatprep.mubr.bf16.mxu0 0
        %1948 = vmatmul.mubr.bf16.gmra.mxu0 %v1913
        %v1949 = vpop.f32.mrf.mxu0
        %v1950 = vadd.f32 %v1868, %v1949
        %v1951 = vpop.f32.mrf.mxu0
        %v1952 = vadd.f32 %v1872, %v1951
        %v1953 = vpop.f32.mrf.mxu0
        %v1954 = vpop.f32.mrf.mxu0
        %1955 = vdwg.mxu0
        %1956 = vmatprep.subr.bf16.mxu0 0
        %1957 = vmatpush1.bf16.msra.mxu0 0
        %1958 = vmatprep.subr.bf16.mxu0 0
        %1959 = vmatpush1.bf16.msra.mxu0 0
        %1960 = vmatprep.subr.bf16.mxu0 0
        %1961 = vmatpush1.bf16.msra.mxu0 0
        %1962 = vmatprep.subr.bf16.mxu0 0
        %1963 = vmatpush1.bf16.msra.mxu0 0
        %1964 = vmatprep.subr.bf16.mxu0 0
        %1965 = vmatpush1.bf16.msra.mxu0 0
        %1966 = vmatprep.subr.bf16.mxu0 0
        %1967 = vmatpush1.bf16.msra.mxu0 0
        %1968 = vmatprep.subr.bf16.mxu0 0
        %1969 = vmatpush1.bf16.msra.mxu0 %v1905
        %1970 = vmatprep.subr.bf16.mxu0 0
        %1971 = vmatpush1.bf16.msra.mxu0 %v1902
        %1972 = vmatprep.subr.bf16.mxu0 0
        %1973 = vmatpush2.bf16.msra.mxu0 0
        %1974 = vmatprep.subr.bf16.mxu0 0
        %1975 = vmatpush2.bf16.msra.mxu0 0
        %1976 = vmatprep.subr.bf16.mxu0 0
        %1977 = vmatpush2.bf16.msra.mxu0 0
        %1978 = vmatprep.subr.bf16.mxu0 0
        %1979 = vmatpush2.bf16.msra.mxu0 0
        %1980 = vmatprep.subr.bf16.mxu0 0
        %1981 = vmatpush2.bf16.msra.mxu0 0
        %1982 = vmatprep.subr.bf16.mxu0 0
        %1983 = vmatpush2.bf16.msra.mxu0 0
        %1984 = vmatprep.subr.bf16.mxu0 0
        %1985 = vmatpush2.bf16.msra.mxu0 0
        %1986 = vmatprep.subr.bf16.mxu0 0
        %1987 = vmatpush2.bf16.msra.mxu0 0
        %1988 = vmatprep.mubr.bf16.mxu0 0
        %1989 = vmatmul.mubr.bf16.gmra.mxu0 %v1913
        %v1990 = vpop.f32.mrf.mxu0
        %v1991 = vadd.f32 %v1876, %v1990
        %v1992 = vpop.f32.mrf.mxu0
        %v1993 = vpop.f32.mrf.mxu0
        %v1994 = vpop.f32.mrf.mxu0
        %1995 = vdwg.mxu0
        %v1996 = vmul.f32 %v1950, %v1950
        %v1997 = vmul.f32 %v1952, %v1952
        %v1998 = vmul.f32 %v1991, %v1991
        %v1999 = vmul.f32 %v1950, %v1996
        %v2000 = vmul.f32 %v1952, %v1997
        %v2001 = vmul.f32 %v1991, %v1998
        %v2002 = vmul.f32 %v1999, 0.044715
        %v2003 = vmul.f32 %v2000, 0.044715
        %v2004 = vmul.f32 %v2001, 0.044715
        %v2005 = vadd.f32 %v1950, %v2002
        %v2006 = vadd.f32 %v1952, %v2003
        %v2007 = vadd.f32 %v1991, %v2004
        %v2008 = vmul.f32 %v2005, 0.7978846
        %v2009 = vmul.f32 %v2006, 0.7978846
        %v2010 = vmul.f32 %v2007, 0.7978846
        %v2011 = vtanh.pop %v2008
        %v2012 = vtanh.pop %v2009
        %v2013 = vtanh.pop %v2010
        %v2014 = vadd.f32 %v2011, 1.0
        %v2015 = vadd.f32 %v2012, 1.0
        %v2016 = vadd.f32 %v2013, 1.0
        %v2017 = vmul.f32 %v2014, 0.5
        %v2018 = vmul.f32 %v2015, 0.5
        %v2019 = vmul.f32 %v2016, 0.5
        %v2020 = vmul.f32 %v1950, %v2017
        %v2021 = vmul.f32 %v1952, %v2018
        %v2022 = vmul.f32 %v1991, %v2019
        %2024 = vrot.lane.b32.xlu0 %v2020, 64
        %v2025 = vpop.permute.xlu0 %2024
        %2028 = vrot.lane.b32.xlu0 %v2021, 64
        %v2029 = vpop.permute.xlu0 %2028
        %2032 = vrot.lane.b32.xlu0 %v2022, 64
        %v2033 = vpop.permute.xlu0 %2032
        %v2035 = vcombine.low %v2020, %v2021
        %v2036 = vcombine.high %v2020, %v2021
        %v2038 = vunpack.c.l.s4 1983009808
        %v2039 = vunpack.c.0.s8 %v2038
        %v2040 = vlaneseq
        %v2041 = vshrl.u32 %v2040, 7
        %v2042 = vsub.s32 %v2039, %v2041
        %v2043 = vrot.slane %v2035, %v2042
        %v2045 = vunpack.c.l.s4 1983009808
        %v2046 = vunpack.c.0.s8 %v2045
        %v2047 = vlaneseq
        %v2048 = vshrl.u32 %v2047, 7
        %v2049 = vsub.s32 %v2046, %v2048
        %v2050 = vrot.slane %v2036, %v2049
        %v2051 = vcombine.low %v2025, %v2029
        %v2052 = vcombine.high %v2025, %v2029
        %v2054 = vunpack.c.l.s4 1983009808
        %v2055 = vunpack.c.0.s8 %v2054
        %v2056 = vlaneseq
        %v2057 = vshrl.u32 %v2056, 7
        %v2058 = vsub.s32 %v2055, %v2057
        %v2059 = vrot.slane %v2051, %v2058
        %v2061 = vunpack.c.l.s4 1983009808
        %v2062 = vunpack.c.0.s8 %v2061
        %v2063 = vlaneseq
        %v2064 = vshrl.u32 %v2063, 7
        %v2065 = vsub.s32 %v2062, %v2064
        %v2066 = vrot.slane %v2052, %v2065
        %v2067 = vcombine.high %v2022, 0.0
        %v2069 = vunpack.c.l.s4 1983009808
        %v2070 = vunpack.c.0.s8 %v2069
        %v2071 = vlaneseq
        %v2072 = vshrl.u32 %v2071, 7
        %v2073 = vsub.s32 %v2070, %v2072
        %v2074 = vrot.slane %v2022, %v2073
        %v2076 = vunpack.c.l.s4 1983009808
        %v2077 = vunpack.c.0.s8 %v2076
        %v2078 = vlaneseq
        %v2079 = vshrl.u32 %v2078, 7
        %v2080 = vsub.s32 %v2077, %v2079
        %v2081 = vrot.slane %v2067, %v2080
        %v2082 = vcombine.high %v2033, 0.0
        %v2084 = vunpack.c.l.s4 1983009808
        %v2085 = vunpack.c.0.s8 %v2084
        %v2086 = vlaneseq
        %v2087 = vshrl.u32 %v2086, 7
        %v2088 = vsub.s32 %v2085, %v2087
        %v2089 = vrot.slane %v2033, %v2088
        %v2091 = vunpack.c.l.s4 1983009808
        %v2092 = vunpack.c.0.s8 %v2091
        %v2093 = vlaneseq
        %v2094 = vshrl.u32 %v2093, 7
        %v2095 = vsub.s32 %v2092, %v2094
        %v2096 = vrot.slane %v2082, %v2095
        %v2097 = vcombine.low %v2043, %v2059
        %v2098 = vcombine.high %v2043, %v2059
        %v2100 = vunpack.c.l.s4 1934713408
        %v2101 = vunpack.c.0.s8 %v2100
        %v2102 = vlaneseq
        %v2103 = vshrl.u32 %v2102, 7
        %v2104 = vsub.s32 %v2101, %v2103
        %v2105 = vrot.slane %v2097, %v2104
        %v2107 = vunpack.c.l.s4 1934713408
        %v2108 = vunpack.c.0.s8 %v2107
        %v2109 = vlaneseq
        %v2110 = vshrl.u32 %v2109, 7
        %v2111 = vsub.s32 %v2108, %v2110
        %v2112 = vrot.slane %v2098, %v2111
        %v2113 = vcombine.low %v2050, %v2066
        %v2114 = vcombine.high %v2050, %v2066
        %v2116 = vunpack.c.l.s4 1934713408
        %v2117 = vunpack.c.0.s8 %v2116
        %v2118 = vlaneseq
        %v2119 = vshrl.u32 %v2118, 7
        %v2120 = vsub.s32 %v2117, %v2119
        %v2121 = vrot.slane %v2113, %v2120
        %v2123 = vunpack.c.l.s4 1934713408
        %v2124 = vunpack.c.0.s8 %v2123
        %v2125 = vlaneseq
        %v2126 = vshrl.u32 %v2125, 7
        %v2127 = vsub.s32 %v2124, %v2126
        %v2128 = vrot.slane %v2114, %v2127
        %v2129 = vcombine.low %v2074, %v2089
        %v2130 = vcombine.high %v2074, %v2089
        %v2132 = vunpack.c.l.s4 1934713408
        %v2133 = vunpack.c.0.s8 %v2132
        %v2134 = vlaneseq
        %v2135 = vshrl.u32 %v2134, 7
        %v2136 = vsub.s32 %v2133, %v2135
        %v2137 = vrot.slane %v2129, %v2136
        %v2139 = vunpack.c.l.s4 1934713408
        %v2140 = vunpack.c.0.s8 %v2139
        %v2141 = vlaneseq
        %v2142 = vshrl.u32 %v2141, 7
        %v2143 = vsub.s32 %v2140, %v2142
        %v2144 = vrot.slane %v2130, %v2143
        %v2145 = vcombine.low %v2081, %v2096
        %v2146 = vcombine.high %v2081, %v2096
        %v2148 = vunpack.c.l.s4 1934713408
        %v2149 = vunpack.c.0.s8 %v2148
        %v2150 = vlaneseq
        %v2151 = vshrl.u32 %v2150, 7
        %v2152 = vsub.s32 %v2149, %v2151
        %v2153 = vrot.slane %v2145, %v2152
        %v2155 = vunpack.c.l.s4 1934713408
        %v2156 = vunpack.c.0.s8 %v2155
        %v2157 = vlaneseq
        %v2158 = vshrl.u32 %v2157, 7
        %v2159 = vsub.s32 %v2156, %v2158
        %v2160 = vrot.slane %v2146, %v2159
        %v2161 = vcombine.low %v2105, %v2137
        %v2162 = vcombine.high %v2105, %v2137
        %v2163 = vcombine.low %v2112, %v2144
        %v2164 = vcombine.high %v2112, %v2144
        %v2165 = vcombine.low %v2121, %v2153
        %v2166 = vcombine.high %v2121, %v2153
        %v2167 = vcombine.low %v2128, %v2160
        %v2168 = vcombine.high %v2128, %v2160
        %v2169 = vlaneseq
        %v2170 = vshrl.u32 %v2169, 7
        %v2171 = vsub.s32 0, %v2170
        %v2172 = vrot.slane %v1853, %v2171
        %2174 = vbcast.lane.b32.xlu0 %v2172, 256
        %v2175 = vpop.permute.xlu0 %2174
        %v2176 = vlaneseq
        %v2177 = vshrl.u32 %v2176, 7
        %v2178 = vsub.s32 1, %v2177
        %v2179 = vrot.slane %v1853, %v2178
        %2181 = vbcast.lane.b32.xlu0 %v2179, 256
        %v2182 = vpop.permute.xlu0 %2181
        %v2183 = vlaneseq
        %v2184 = vshrl.u32 %v2183, 7
        %v2185 = vsub.s32 2, %v2184
        %v2186 = vrot.slane %v1853, %v2185
        %2188 = vbcast.lane.b32.xlu0 %v2186, 256
        %v2189 = vpop.permute.xlu0 %2188
        %v2190 = vlaneseq
        %v2191 = vshrl.u32 %v2190, 7
        %v2192 = vsub.s32 3, %v2191
        %v2193 = vrot.slane %v1853, %v2192
        %2195 = vbcast.lane.b32.xlu0 %v2193, 256
        %v2196 = vpop.permute.xlu0 %2195
        %v2197 = vlaneseq
        %v2198 = vshrl.u32 %v2197, 7
        %v2199 = vsub.s32 4, %v2198
        %v2200 = vrot.slane %v1853, %v2199
        %2202 = vbcast.lane.b32.xlu0 %v2200, 256
        %v2203 = vpop.permute.xlu0 %2202
        %v2204 = vlaneseq
        %v2205 = vshrl.u32 %v2204, 7
        %v2206 = vsub.s32 5, %v2205
        %v2207 = vrot.slane %v1853, %v2206
        %2209 = vbcast.lane.b32.xlu0 %v2207, 256
        %v2210 = vpop.permute.xlu0 %2209
        %v2211 = vlaneseq
        %v2212 = vshrl.u32 %v2211, 7
        %v2213 = vsub.s32 6, %v2212
        %v2214 = vrot.slane %v1853, %v2213
        %2216 = vbcast.lane.b32.xlu0 %v2214, 256
        %v2217 = vpop.permute.xlu0 %2216
        %v2218 = vlaneseq
        %v2219 = vshrl.u32 %v2218, 7
        %v2220 = vsub.s32 7, %v2219
        %v2221 = vrot.slane %v1853, %v2220
        %2223 = vbcast.lane.b32.xlu0 %v2221, 256
        %v2224 = vpop.permute.xlu0 %2223
        %v2225 = vmul.f32 %v2161, %v2175
        %v2226 = vmul.f32 %v2162, %v2182
        %v2227 = vmul.f32 %v2163, %v2189
        %v2228 = vmul.f32 %v2164, %v2196
        %v2229 = vmul.f32 %v2165, %v2203
        %v2230 = vmul.f32 %v2166, %v2210
        %v2231 = vmul.f32 %v2167, %v2217
        %v2232 = vmul.f32 %v2168, %v2224
        %v2233 = vcombine.low %v2225, %v2227
        %v2234 = vcombine.high %v2225, %v2227
        %v2236 = vunpack.c.l.s4 1983009808
        %v2237 = vunpack.c.0.s8 %v2236
        %v2238 = vlaneseq
        %v2239 = vshrl.u32 %v2238, 7
        %v2240 = vsub.s32 %v2237, %v2239
        %v2241 = vrot.slane %v2233, %v2240
        %v2243 = vunpack.c.l.s4 1983009808
        %v2244 = vunpack.c.0.s8 %v2243
        %v2245 = vlaneseq
        %v2246 = vshrl.u32 %v2245, 7
        %v2247 = vsub.s32 %v2244, %v2246
        %v2248 = vrot.slane %v2234, %v2247
        %v2249 = vcombine.low %v2226, %v2228
        %v2250 = vcombine.high %v2226, %v2228
        %v2252 = vunpack.c.l.s4 1983009808
        %v2253 = vunpack.c.0.s8 %v2252
        %v2254 = vlaneseq
        %v2255 = vshrl.u32 %v2254, 7
        %v2256 = vsub.s32 %v2253, %v2255
        %v2257 = vrot.slane %v2249, %v2256
        %v2259 = vunpack.c.l.s4 1983009808
        %v2260 = vunpack.c.0.s8 %v2259
        %v2261 = vlaneseq
        %v2262 = vshrl.u32 %v2261, 7
        %v2263 = vsub.s32 %v2260, %v2262
        %v2264 = vrot.slane %v2250, %v2263
        %v2265 = vcombine.low %v2229, %v2231
        %v2266 = vcombine.high %v2229, %v2231
        %v2268 = vunpack.c.l.s4 1983009808
        %v2269 = vunpack.c.0.s8 %v2268
        %v2270 = vlaneseq
        %v2271 = vshrl.u32 %v2270, 7
        %v2272 = vsub.s32 %v2269, %v2271
        %v2273 = vrot.slane %v2265, %v2272
        %v2275 = vunpack.c.l.s4 1983009808
        %v2276 = vunpack.c.0.s8 %v2275
        %v2277 = vlaneseq
        %v2278 = vshrl.u32 %v2277, 7
        %v2279 = vsub.s32 %v2276, %v2278
        %v2280 = vrot.slane %v2266, %v2279
        %v2281 = vcombine.low %v2230, %v2232
        %v2282 = vcombine.high %v2230, %v2232
        %v2284 = vunpack.c.l.s4 1983009808
        %v2285 = vunpack.c.0.s8 %v2284
        %v2286 = vlaneseq
        %v2287 = vshrl.u32 %v2286, 7
        %v2288 = vsub.s32 %v2285, %v2287
        %v2289 = vrot.slane %v2281, %v2288
        %v2291 = vunpack.c.l.s4 1983009808
        %v2292 = vunpack.c.0.s8 %v2291
        %v2293 = vlaneseq
        %v2294 = vshrl.u32 %v2293, 7
        %v2295 = vsub.s32 %v2292, %v2294
        %v2296 = vrot.slane %v2282, %v2295
        %v2297 = vcombine.low %v2241, %v2257
        %v2298 = vcombine.high %v2241, %v2257
        %v2300 = vunpack.c.l.s4 1934713408
        %v2301 = vunpack.c.0.s8 %v2300
        %v2302 = vlaneseq
        %v2303 = vshrl.u32 %v2302, 7
        %v2304 = vsub.s32 %v2301, %v2303
        %v2305 = vrot.slane %v2297, %v2304
        %v2307 = vunpack.c.l.s4 1934713408
        %v2308 = vunpack.c.0.s8 %v2307
        %v2309 = vlaneseq
        %v2310 = vshrl.u32 %v2309, 7
        %v2311 = vsub.s32 %v2308, %v2310
        %v2312 = vrot.slane %v2298, %v2311
        %v2313 = vcombine.low %v2248, %v2264
        %v2315 = vunpack.c.l.s4 1934713408
        %v2316 = vunpack.c.0.s8 %v2315
        %v2317 = vlaneseq
        %v2318 = vshrl.u32 %v2317, 7
        %v2319 = vsub.s32 %v2316, %v2318
        %v2320 = vrot.slane %v2313, %v2319
        %v2321 = vcombine.low %v2273, %v2289
        %v2322 = vcombine.high %v2273, %v2289
        %v2324 = vunpack.c.l.s4 1934713408
        %v2325 = vunpack.c.0.s8 %v2324
        %v2326 = vlaneseq
        %v2327 = vshrl.u32 %v2326, 7
        %v2328 = vsub.s32 %v2325, %v2327
        %v2329 = vrot.slane %v2321, %v2328
        %v2331 = vunpack.c.l.s4 1934713408
        %v2332 = vunpack.c.0.s8 %v2331
        %v2333 = vlaneseq
        %v2334 = vshrl.u32 %v2333, 7
        %v2335 = vsub.s32 %v2332, %v2334
        %v2336 = vrot.slane %v2322, %v2335
        %v2337 = vcombine.low %v2280, %v2296
        %v2339 = vunpack.c.l.s4 1934713408
        %v2340 = vunpack.c.0.s8 %v2339
        %v2341 = vlaneseq
        %v2342 = vshrl.u32 %v2341, 7
        %v2343 = vsub.s32 %v2340, %v2342
        %v2344 = vrot.slane %v2337, %v2343
        %v2345 = vcombine.low %v2305, %v2329
        %v2346 = vcombine.high %v2305, %v2329
        %v2347 = vcombine.low %v2312, %v2336
        %v2348 = vcombine.high %v2312, %v2336
        %v2349 = vcombine.low %v2320, %v2344
        %v2350 = vcombine.high %v2320, %v2344
        %2352 = vrot.lane.b32.xlu0 %v2346, 64
        %v2353 = vpop.permute.xlu0 %2352
        %2356 = vrot.lane.b32.xlu0 %v2348, 64
        %v2357 = vpop.permute.xlu0 %2356
        %2360 = vrot.lane.b32.xlu0 %v2350, 64
        %v2361 = vpop.permute.xlu0 %2360
        %vm2363 = vcmask 523264
        %v2364 = vsel %vm2363, %v2345, %v2353
        %v2365 = vsel %vm2363, %v2347, %v2357
        %v2366 = vsel %vm2363, %v2349, %v2361
        %v2367 = vpack.c.bf16 %v2364, %v2364
        %v2368 = vpack.c.bf16 %v2365, %v2365
        %v2369 = vpack.c.bf16 %v2366, %v2366
        %v2370 = vld [vmem:[%s11] sm:$0xf]
        %v2371 = vld [vmem:[%s11 + $0x4] sm:$0xf]
        %v2372 = vld [vmem:[%s11 + $0x8] sm:$0xf]
        %v2373 = vld [vmem:[%s11 + $0xc] sm:$0xf]
        %v2374 = vld [vmem:[%s11 + $0x10] sm:$0xf]
        %v2375 = vld [vmem:[%s11 + $0x14] sm:$0xf]
        %v2376 = vld [vmem:[%s11 + $0x18] sm:$0xf]
        %v2377 = vld [vmem:[%s11 + $0x1c] sm:$0xf]
        %v2378 = vld [vmem:[%s11 + $0x20] sm:$0xf]
        %v2379 = vld [vmem:[%s11 + $0x24] sm:$0xf]
        %v2380 = vld [vmem:[%s11 + $0x28] sm:$0xf]
        %v2381 = vld [vmem:[%s11 + $0x2c] sm:$0xf]
        %v2382 = vld [vmem:[%s11 + $0x30] sm:$0xf]
        %v2383 = vld [vmem:[%s11 + $0x34] sm:$0xf]
        %v2384 = vld [vmem:[%s11 + $0x38] sm:$0xf]
        %v2385 = vld [vmem:[%s11 + $0x3c] sm:$0xf]
        %v2386 = vld [vmem:[%s11 + $0x40] sm:$0xf]
        %v2387 = vld [vmem:[%s11 + $0x44] sm:$0xf]
        %v2388 = vld [vmem:[%s11 + $0x48] sm:$0xf]
        %v2389 = vld [vmem:[%s11 + $0x4c] sm:$0xf]
        %v2390 = vld [vmem:[%s11 + $0x50] sm:$0xf]
        %v2391 = vld [vmem:[%s11 + $0x54] sm:$0xf]
        %v2392 = vld [vmem:[%s11 + $0x58] sm:$0xf]
        %v2393 = vld [vmem:[%s11 + $0x5c] sm:$0xf]
        %v2394 = vld [vmem:[%s11 + $0x60] sm:$0xf]
        %v2395 = vld [vmem:[%s11 + $0x64] sm:$0xf]
        %v2396 = vld [vmem:[%s11 + $0x68] sm:$0xf]
        %v2397 = vld [vmem:[%s11 + $0x6c] sm:$0xf]
        %v2398 = vld [vmem:[%s11 + $0x70] sm:$0xf]
        %v2399 = vld [vmem:[%s11 + $0x74] sm:$0xf]
        %v2400 = vld [vmem:[%s11 + $0x78] sm:$0xf]
        %v2401 = vld [vmem:[%s11 + $0x7c] sm:$0xf]
        %v2402 = vld [vmem:[%s11 + $0x80] sm:$0xf]
        %v2403 = vld [vmem:[%s11 + $0x84] sm:$0xf]
        %v2404 = vld [vmem:[%s11 + $0x88] sm:$0xf]
        %v2405 = vld [vmem:[%s11 + $0x8c] sm:$0xf]
        %v2406 = vld [vmem:[%s11 + $0x90] sm:$0xf]
        %v2407 = vld [vmem:[%s11 + $0x94] sm:$0xf]
        %v2408 = vld [vmem:[%s11 + $0x98] sm:$0xf]
        %v2409 = vld [vmem:[%s11 + $0x9c] sm:$0xf]
        %v2410 = vld [vmem:[%s11 + $0xa0] sm:$0xf]
        %v2411 = vld [vmem:[%s11 + $0xa4] sm:$0xf]
        %v2412 = vld [vmem:[%s11 + $0xa8] sm:$0xf]
        %v2413 = vld [vmem:[%s11 + $0xac] sm:$0xf]
        %v2414 = vld [vmem:[%s11 + $0xb0] sm:$0xf]
        %v2415 = vld [vmem:[%s11 + $0xb4] sm:$0xf]
        %v2416 = vld [vmem:[%s11 + $0xb8] sm:$0xf]
        %v2417 = vld [vmem:[%s11 + $0xbc] sm:$0xf]
        %v2418 = vld [vmem:[%s12] sm:$0x3f]
        %v2420 = vsel %vm1825, %v1853, 0
        %vm2422 = vcmask 1045504
        %v2424 = vsel %vm2422, %v2418, 0
        %2426 = vmatprep.subr.mxu0 0.0
        %2427 = vmatpush1.msra.mxu0 0.0
        %2428 = vmatprep.subr.mxu0 0.0
        %2429 = vmatpush1.msra.mxu0 0.0
        %2430 = vmatprep.subr.mxu0 0.0
        %2431 = vmatpush1.msra.mxu0 0.0
        %2432 = vmatprep.subr.mxu0 0.0
        %2433 = vmatpush1.msra.mxu0 0.0
        %2434 = vmatprep.subr.mxu0 0.0
        %2435 = vmatpush1.msra.mxu0 0.0
        %2436 = vmatprep.subr.mxu0 0.0
        %2437 = vmatpush1.msra.mxu0 0.0
        %2438 = vmatprep.subr.mxu0 0.0
        %2439 = vmatpush1.msra.mxu0 0.0
        %2440 = vmatprep.subr.mxu0 0.0
        %2441 = vmatpush1.msra.mxu0 0.0
        %2442 = vmatprep.subr.mxu0 0.0
        %2443 = vmatpush1.msra.mxu0 0.0
        %2444 = vmatprep.subr.mxu0 0.0
        %2445 = vmatpush1.msra.mxu0 0.0
        %2446 = vmatprep.subr.mxu0 0.0
        %2447 = vmatpush1.msra.mxu0 0.0
        %2448 = vmatprep.subr.mxu0 0.0
        %2449 = vmatpush1.msra.mxu0 0.0
        %2450 = vmatprep.subr.mxu0 0.0
        %2451 = vmatpush1.msra.mxu0 0.0
        %2452 = vmatprep.subr.mxu0 0.0
        %2453 = vmatpush1.msra.mxu0 0.0
        %2454 = vmatprep.subr.mxu0 0.0
        %2455 = vmatpush1.msra.mxu0 0.0
        %2456 = vmatprep.subr.mxu0 0.0
        %2457 = vmatpush1.msra.mxu0 %v2424
        %2458 = vmatprep.subr.mxu0 0.0
        %2459 = vmatpush2.msra.mxu0 0.0
        %2460 = vmatprep.subr.mxu0 0.0
        %2461 = vmatpush2.msra.mxu0 0.0
        %2462 = vmatprep.subr.mxu0 0.0
        %2463 = vmatpush2.msra.mxu0 0.0
        %2464 = vmatprep.subr.mxu0 0.0
        %2465 = vmatpush2.msra.mxu0 0.0
        %2466 = vmatprep.subr.mxu0 0.0
        %2467 = vmatpush2.msra.mxu0 0.0
        %2468 = vmatprep.subr.mxu0 0.0
        %2469 = vmatpush2.msra.mxu0 0.0
        %2470 = vmatprep.subr.mxu0 0.0
        %2471 = vmatpush2.msra.mxu0 0.0
        %2472 = vmatprep.subr.mxu0 0.0
        %2473 = vmatpush2.msra.mxu0 0.0
        %2474 = vmatprep.subr.mxu0 0.0
        %2475 = vmatpush2.msra.mxu0 0.0
        %2476 = vmatprep.subr.mxu0 0.0
        %2477 = vmatpush2.msra.mxu0 0.0
        %2478 = vmatprep.subr.mxu0 0.0
        %2479 = vmatpush2.msra.mxu0 0.0
        %2480 = vmatprep.subr.mxu0 0.0
        %2481 = vmatpush2.msra.mxu0 0.0
        %2482 = vmatprep.subr.mxu0 0.0
        %2483 = vmatpush2.msra.mxu0 0.0
        %2484 = vmatprep.subr.mxu0 0.0
        %2485 = vmatpush2.msra.mxu0 0.0
        %2486 = vmatprep.subr.mxu0 0.0
        %2487 = vmatpush2.msra.mxu0 0.0
        %2488 = vmatprep.subr.mxu0 0.0
        %2489 = vmatpush2.msra.mxu0 0.0
        %2490 = vmatprep.mubr.f32.mxu0 0.0
        %2491 = vmatmul.mubr.f32.gmra.mxu0 %v2420
        %v2492 = vpop.f32.mrf.mxu0
        %v2493 = vadd.f32 0.0, %v2492
        %v2494 = vpop.f32.mrf.mxu0
        %2495 = vdwg.mxu0
        %v2544 = vunpack.c.l.b16 %v2370
        %v2545 = vunpack.c.l.b16 %v2371
        %v2546 = vunpack.c.l.b16 %v2372
        %v2547 = vunpack.c.l.b16 %v2373
        %v2548 = vunpack.c.l.b16 %v2374
        %v2549 = vunpack.c.l.b16 %v2375
        %v2550 = vunpack.c.l.b16 %v2376
        %v2551 = vunpack.c.l.b16 %v2377
        %v2552 = vunpack.c.l.b16 %v2378
        %v2553 = vunpack.c.l.b16 %v2379
        %v2554 = vunpack.c.l.b16 %v2380
        %v2555 = vunpack.c.l.b16 %v2381
        %v2556 = vunpack.c.l.b16 %v2382
        %v2557 = vunpack.c.l.b16 %v2383
        %v2558 = vunpack.c.l.b16 %v2384
        %v2559 = vunpack.c.l.b16 %v2385
        %v2560 = vunpack.c.l.b16 %v2386
        %v2561 = vunpack.c.l.b16 %v2387
        %v2562 = vunpack.c.l.b16 %v2388
        %v2563 = vunpack.c.l.b16 %v2389
        %v2564 = vunpack.c.l.b16 %v2390
        %v2565 = vunpack.c.l.b16 %v2391
        %v2566 = vunpack.c.l.b16 %v2392
        %v2567 = vunpack.c.l.b16 %v2393
        %v2568 = vunpack.c.l.b16 %v2394
        %v2569 = vunpack.c.l.b16 %v2395
        %v2570 = vunpack.c.l.b16 %v2396
        %v2571 = vunpack.c.l.b16 %v2397
        %v2572 = vunpack.c.l.b16 %v2398
        %v2573 = vunpack.c.l.b16 %v2399
        %v2574 = vunpack.c.l.b16 %v2400
        %v2575 = vunpack.c.l.b16 %v2401
        %v2576 = vunpack.c.l.b16 %v2402
        %v2577 = vunpack.c.l.b16 %v2403
        %v2578 = vunpack.c.l.b16 %v2404
        %v2579 = vunpack.c.l.b16 %v2405
        %v2580 = vunpack.c.l.b16 %v2406
        %v2581 = vunpack.c.l.b16 %v2407
        %v2582 = vunpack.c.l.b16 %v2408
        %v2583 = vunpack.c.l.b16 %v2409
        %v2584 = vunpack.c.l.b16 %v2410
        %v2585 = vunpack.c.l.b16 %v2411
        %v2586 = vunpack.c.l.b16 %v2412
        %v2587 = vunpack.c.l.b16 %v2413
        %v2588 = vunpack.c.l.b16 %v2414
        %v2589 = vunpack.c.l.b16 %v2415
        %v2590 = vunpack.c.l.b16 %v2416
        %v2591 = vunpack.c.l.b16 %v2417
        %v2592 = vpack.c.b16 %v2545, %v2544
        %v2593 = vpack.c.b16 %v2547, %v2546
        %v2594 = vpack.c.b16 %v2549, %v2548
        %v2595 = vpack.c.b16 %v2551, %v2550
        %v2596 = vpack.c.b16 %v2553, %v2552
        %v2597 = vpack.c.b16 %v2555, %v2554
        %v2598 = vpack.c.b16 %v2557, %v2556
        %v2599 = vpack.c.b16 %v2559, %v2558
        %v2600 = vpack.c.b16 %v2561, %v2560
        %v2601 = vpack.c.b16 %v2563, %v2562
        %v2602 = vpack.c.b16 %v2565, %v2564
        %v2603 = vpack.c.b16 %v2567, %v2566
        %v2604 = vpack.c.b16 %v2569, %v2568
        %v2605 = vpack.c.b16 %v2571, %v2570
        %v2606 = vpack.c.b16 %v2573, %v2572
        %v2607 = vpack.c.b16 %v2575, %v2574
        %v2608 = vpack.c.b16 %v2577, %v2576
        %v2609 = vpack.c.b16 %v2579, %v2578
        %v2610 = vpack.c.b16 %v2581, %v2580
        %v2611 = vpack.c.b16 %v2583, %v2582
        %v2612 = vpack.c.b16 %v2585, %v2584
        %v2613 = vpack.c.b16 %v2587, %v2586
        %v2614 = vpack.c.b16 %v2589, %v2588
        %v2615 = vpack.c.b16 %v2591, %v2590
        %2640 = vmatprep.subr.bf16.mxu0 0
        %2641 = vmatpush1.bf16.msra.mxu0 %v2599
        %2642 = vmatprep.subr.bf16.mxu0 0
        %2643 = vmatpush1.bf16.msra.mxu0 %v2598
        %2644 = vmatprep.subr.bf16.mxu0 0
        %2645 = vmatpush1.bf16.msra.mxu0 %v2597
        %2646 = vmatprep.subr.bf16.mxu0 0
        %2647 = vmatpush1.bf16.msra.mxu0 %v2596
        %2648 = vmatprep.subr.bf16.mxu0 0
        %2649 = vmatpush1.bf16.msra.mxu0 %v2595
        %2650 = vmatprep.subr.bf16.mxu0 0
        %2651 = vmatpush1.bf16.msra.mxu0 %v2594
        %2652 = vmatprep.subr.bf16.mxu0 0
        %2653 = vmatpush1.bf16.msra.mxu0 %v2593
        %2654 = vmatprep.subr.bf16.mxu0 0
        %2655 = vmatpush1.bf16.msra.mxu0 %v2592
        %2656 = vmatprep.subr.bf16.mxu0 0
        %2657 = vmatpush2.bf16.msra.mxu0 %v2607
        %2658 = vmatprep.subr.bf16.mxu0 0
        %2659 = vmatpush2.bf16.msra.mxu0 %v2606
        %2660 = vmatprep.subr.bf16.mxu0 0
        %2661 = vmatpush2.bf16.msra.mxu0 %v2605
        %2662 = vmatprep.subr.bf16.mxu0 0
        %2663 = vmatpush2.bf16.msra.mxu0 %v2604
        %2664 = vmatprep.subr.bf16.mxu0 0
        %2665 = vmatpush2.bf16.msra.mxu0 %v2603
        %2666 = vmatprep.subr.bf16.mxu0 0
        %2667 = vmatpush2.bf16.msra.mxu0 %v2602
        %2668 = vmatprep.subr.bf16.mxu0 0
        %2669 = vmatpush2.bf16.msra.mxu0 %v2601
        %2670 = vmatprep.subr.bf16.mxu0 0
        %2671 = vmatpush2.bf16.msra.mxu0 %v2600
        %2672 = vmatprep.mubr.bf16.mxu0 %v2368
        %2673 = vmatmul.mubr.bf16.gmra.mxu0 %v2367
        %v2674 = vpop.f32.mrf.mxu0
        %v2675 = vadd.f32 %v2493, %v2674
        %v2676 = vpop.f32.mrf.mxu0
        %v2677 = vpop.f32.mrf.mxu0
        %v2678 = vpop.f32.mrf.mxu0
        %2679 = vdwg.mxu0
        %2680 = vmatprep.subr.bf16.mxu0 0
        %2681 = vmatpush1.bf16.msra.mxu0 %v2615
        %2682 = vmatprep.subr.bf16.mxu0 0
        %2683 = vmatpush1.bf16.msra.mxu0 %v2614
        %2684 = vmatprep.subr.bf16.mxu0 0
        %2685 = vmatpush1.bf16.msra.mxu0 %v2613
        %2686 = vmatprep.subr.bf16.mxu0 0
        %2687 = vmatpush1.bf16.msra.mxu0 %v2612
        %2688 = vmatprep.subr.bf16.mxu0 0
        %2689 = vmatpush1.bf16.msra.mxu0 %v2611
        %2690 = vmatprep.subr.bf16.mxu0 0
        %2691 = vmatpush1.bf16.msra.mxu0 %v2610
        %2692 = vmatprep.subr.bf16.mxu0 0
        %2693 = vmatpush1.bf16.msra.mxu0 %v2609
        %2694 = vmatprep.subr.bf16.mxu0 0
        %2695 = vmatpush1.bf16.msra.mxu0 %v2608
        %2696 = vmatprep.subr.bf16.mxu0 0
        %2697 = vmatpush2.bf16.msra.mxu0 0
        %2698 = vmatprep.subr.bf16.mxu0 0
        %2699 = vmatpush2.bf16.msra.mxu0 0
        %2700 = vmatprep.subr.bf16.mxu0 0
        %2701 = vmatpush2.bf16.msra.mxu0 0
        %2702 = vmatprep.subr.bf16.mxu0 0
        %2703 = vmatpush2.bf16.msra.mxu0 0
        %2704 = vmatprep.subr.bf16.mxu0 0
        %2705 = vmatpush2.bf16.msra.mxu0 0
        %2706 = vmatprep.subr.bf16.mxu0 0
        %2707 = vmatpush2.bf16.msra.mxu0 0
        %2708 = vmatprep.subr.bf16.mxu0 0
        %2709 = vmatpush2.bf16.msra.mxu0 0
        %2710 = vmatprep.subr.bf16.mxu0 0
        %2711 = vmatpush2.bf16.msra.mxu0 0
        %2712 = vmatprep.mubr.bf16.mxu0 0
        %2713 = vmatmul.mubr.bf16.gmra.mxu0 %v2369
        %v2714 = vpop.f32.mrf.mxu0
        %v2715 = vadd.f32 %v2675, %v2714
        %v2716 = vpop.f32.mrf.mxu0
        %v2717 = vpop.f32.mrf.mxu0
        %v2718 = vpop.f32.mrf.mxu0
        %2719 = vdwg.mxu0
        %v2720 = vpack.c.bf16 %v2715, %v2715
        %v2721 = vld [vmem:[%s13] sm:$0xf]
        %v2722 = vld [vmem:[%s13 + $0x4] sm:$0xf]
        %v2723 = vld [vmem:[%s13 + $0x8] sm:$0xf]
        %v2724 = vld [vmem:[%s13 + $0xc] sm:$0xf]
        %v2725 = vld [vmem:[%s14] sm:$0x1]
        %v2727 = vlaneseq
        %v2728 = vshrl.u32 %v2727, 7
        %v2729 = vsub.s32 0, %v2728
        %v2730 = vrot.slane %v2725, %v2729
        %v2736 = vunpack.c.l.b16 %v2721
        %v2737 = vunpack.c.l.b16 %v2722
        %v2738 = vunpack.c.l.b16 %v2723
        %v2739 = vunpack.c.l.b16 %v2724
        %v2740 = vpack.c.b16 %v2737, %v2736
        %v2741 = vpack.c.b16 %v2739, %v2738
        %v2745 = vsel %vm570, %v2720, 0
        %2747 = vmatprep.subr.bf16.mxu0 0
        %2748 = vmatpush1.bf16.msra.mxu0 0
        %2749 = vmatprep.subr.bf16.mxu0 0
        %2750 = vmatpush1.bf16.msra.mxu0 0
        %2751 = vmatprep.subr.bf16.mxu0 0
        %2752 = vmatpush1.bf16.msra.mxu0 0
        %2753 = vmatprep.subr.bf16.mxu0 0
        %2754 = vmatpush1.bf16.msra.mxu0 0
        %2755 = vmatprep.subr.bf16.mxu0 0
        %2756 = vmatpush1.bf16.msra.mxu0 0
        %2757 = vmatprep.subr.bf16.mxu0 0
        %2758 = vmatpush1.bf16.msra.mxu0 0
        %2759 = vmatprep.subr.bf16.mxu0 0
        %2760 = vmatpush1.bf16.msra.mxu0 %v2741
        %2761 = vmatprep.subr.bf16.mxu0 0
        %2762 = vmatpush1.bf16.msra.mxu0 %v2740
        %2763 = vmatprep.subr.bf16.mxu0 0
        %2764 = vmatpush2.bf16.msra.mxu0 0
        %2765 = vmatprep.subr.bf16.mxu0 0
        %2766 = vmatpush2.bf16.msra.mxu0 0
        %2767 = vmatprep.subr.bf16.mxu0 0
        %2768 = vmatpush2.bf16.msra.mxu0 0
        %2769 = vmatprep.subr.bf16.mxu0 0
        %2770 = vmatpush2.bf16.msra.mxu0 0
        %2771 = vmatprep.subr.bf16.mxu0 0
        %2772 = vmatpush2.bf16.msra.mxu0 0
        %2773 = vmatprep.subr.bf16.mxu0 0
        %2774 = vmatpush2.bf16.msra.mxu0 0
        %2775 = vmatprep.subr.bf16.mxu0 0
        %2776 = vmatpush2.bf16.msra.mxu0 0
        %2777 = vmatprep.subr.bf16.mxu0 0
        %2778 = vmatpush2.bf16.msra.mxu0 0
        %2779 = vmatprep.mubr.bf16.mxu0 0
        %2780 = vmatmul.mubr.bf16.gmra.mxu0 %v2745
        %v2781 = vpop.f32.mrf.mxu0
        %v2782 = vadd.f32 %v2730, %v2781
        %v2783 = vpop.f32.mrf.mxu0
        %v2784 = vpop.f32.mrf.mxu0
        %v2785 = vpop.f32.mrf.mxu0
        %2786 = vdwg.mxu0
        %v2787 = vld [vmem:[%s15] sm:$0x1]
        %v2788 = vld [vmem:[%s16] sm:$0x1]
        %v2789 = vsel %vm570, %v2782, 0.0
        %2790 = vadd.xlane.f32.xlu0 %v2789
        %v2791 = vpop.xlane.xlu0 %2790
        %v2792 = vmul.f32 %v2791, %v1715
        %v2793 = vsub.f32 %v2782, %v2792
        %v2794 = vmul.f32 %v2793, %v2793
        %v2795 = vsel %vm570, %v2794, 0.0
        %2796 = vadd.xlane.f32.xlu0 %v2795
        %v2797 = vpop.xlane.xlu0 %2796
        %v2798 = vmul.f32 %v2797, %v1715
        %v2799 = vadd.f32 %v2798, 1e-12
        %v2800 = vrsqrt.pop %v2799
        %v2801 = vmul.f32 %v2793, %v2800
        %v2803 = vlaneseq
        %v2804 = vshrl.u32 %v2803, 7
        %v2805 = vsub.s32 0, %v2804
        %v2806 = vrot.slane %v2787, %v2805
        %v2808 = vmul.f32 %v2801, %v2806
        %v2810 = vlaneseq
        %v2811 = vshrl.u32 %v2810, 7
        %v2812 = vsub.s32 0, %v2811
        %v2813 = vrot.slane %v2788, %v2812
        %v2815 = vadd.f32 %v2808, %v2813
        %v2816 = vadd.f32 %v1740, %v2815
        %2817 = vst.msk [vmem:[%s539] sm:$0xff] %vm570, %v2816
        %s2818 = sand.u32 %s401, 1
        %s2819 = scalar_lea.sflag [#allocation3], %s2818
        %s2820 = sand.u32 %s401, 1
        %s2821 = smul.addr %s2820, 8
        %s2822 = scalar_lea.vmem [#allocation2], %s2821
        // Predicated region
        $region89: #{tpu_custom_call.1} parent=87 // pred_check
          %p2823 = pneg %p411
        $region90: #{tpu_custom_call.1} parent=87 // pred_check_branch
          %2825 = sbr.rel (%p2823) target = $region92
        $region91: #{tpu_custom_call.1} parent=87 // pred_region
          %s2827 = ssub.s32 128, 128
          %2828 = vsyncadd %s2819, %s2827
          %s2829 = smul.addr %s31, 128
          %s2830 = scalar_lea.hbm %s17, %s2829
          %s2832 = sshll.u32 %s2822, 4
          %s2833 = int_to_ptr.vmem [resolvable:$true] %s2832
          %2835 = dma.vmem_to_hbm [thread:$0]  %s2833, 128, %s2830, %s2819
        $region92: #{tpu_custom_call.1} parent=87 // pred_fallthru
          _
      $region88: #{tpu_custom_call.1} parent=5 // pred_fallthru
        _
      %p2836 = scmp.le.s32.totalorder 2, %s26
      // Predicated region
      $region93: #{tpu_custom_call.1} parent=5 // pred_check
        %p2837 = pneg %p2836
      $region94: #{tpu_custom_call.1} parent=5 // pred_check_branch
        %2839 = sbr.rel (%p2837) target = $region96
      $region95: #{tpu_custom_call.1} parent=5 // pred_region
        %s2840 = ssub.s32 %s26, 2
        // Predicated region
        $region97: #{tpu_custom_call.1} parent=95 // pred_check
          %p2841 = pneg %p417
        $region98: #{tpu_custom_call.1} parent=95 // pred_check_branch
          %2843 = sbr.rel (%p2841) target = $region100
        $region99: #{tpu_custom_call.1} parent=95 // pred_region
          %s2844 = sand.u32 %s402, 1
          %s2845 = scalar_lea.sflag [#allocation3], %s2844
          %s2846 = sand.u32 %s402, 1
          %s2847 = smul.addr %s2846, 8
          %s2848 = scalar_lea.vmem [#allocation2], %s2847
          %2849 = dma.done %s2845, 128
        $region100: #{tpu_custom_call.1} parent=95 // pred_fallthru
          _
      $region96: #{tpu_custom_call.1} parent=5 // pred_fallthru
        _
    $region6: #{tpu_custom_call.1} parent=1 // loop_footer
      %s30 = sadd.s32 1, %s26
    $region7: #{tpu_custom_call.1} parent=1 // loop_footer_branch
      %25 = sbr.rel target = $region3
    $region8: #{tpu_custom_call.1} parent=1 // loop_exit
      _
    %2850 = vsyncpa [#allocation3], 1
    %s2851 = scalar_lea.sflag [#allocation3], 1
    %2852 = vsyncpa %s2851, 1

</llo_original>
